<compile_context>
chip_gen: v7x
topology: tpu7x:2x2x1
jax: 0.10.0
libtpu: 0.0.40
codegen_flags: <defaults>
</compile_context>

<pallas_src>
import functools
import math

import jax
import jax.numpy as jnp
from jax import lax
from jax.experimental import pallas as pl
from jax.experimental.pallas import tpu as pltpu


def _round_up(x, m):
    return (x + m - 1) // m * m


_VMEM_CAP_BYTES = None


def _vmem_capacity_bytes():
    """Per-core VMEM capacity (fallback 64 MiB if the query is unavailable)."""
    global _VMEM_CAP_BYTES
    if _VMEM_CAP_BYTES is None:
        try:
            _VMEM_CAP_BYTES = int(pltpu.get_tpu_info().vmem_capacity_bytes)
        except Exception:
            _VMEM_CAP_BYTES = 64 * 1024 * 1024
    return _VMEM_CAP_BYTES


# --------------------------------------------------------------------------
# Pallas kernel: fused input projection + block-diag bidirectional LSTM + fc.
# --------------------------------------------------------------------------
def lstm_tagger_kernel(
    x2d_ref,      # [S*Bp, 2E]  lanes 0:E = x_t, E:2E = x_{S-1-t} (time-major, flat)
    wih_ref,      # [2E, 4*Gp]  fused fwd/bwd input->gate weights, blocks (i,f,o,g)
    b_ref,        # [1, 4*Gp]   fused biases (b_ih + b_hh), same layout
    whh_ref,      # [Gp, 4*Gp]  block-diagonal hidden->gate weights
    wfc_ref,      # [Gp, Cp]    fc weights (rows 0:H fwd, H:2H bwd, rest zero)
    bfc_ref,      # [1, Cp]     fc bias (C padded to Cp)
    out_ref,      # [S*Bp, Cp]  logits (time-major, flattened, lane-padded)
    xg_ref,       # scratch VMEM [S, Bp, 4*Gp]  precomputed x-gates (+bias)
    h_ref,        # scratch VMEM [S, Bp, Gp]    hidden states (fwd|bwd in lanes)
    *,
    hidden_size,
):
    S, Bp, Gp = h_ref.shape
    H = hidden_size
    G3 = 3 * Gp
    G4 = 4 * Gp

    # ---- Stage 1: hoisted input projection (both directions, bias folded) ----
    xg = jnp.dot(x2d_ref[...], wih_ref[...],
                 preferred_element_type=jnp.float32) + b_ref[...]    # [S*Bp, 4Gp]
    xg_ref[...] = xg.reshape(S, Bp, G4)

    # Padding lanes of the hidden scratch are consumed by the fc matmul;
    # zero them once so they contribute nothing (and are never NaN).
    h_ref[...] = jnp.zeros_like(h_ref)

    whh = whh_ref[...]

    # ---- Stage 2: fused bidirectional recurrence --------------------------
    # carry h/c are [Bp, Gp]: lanes 0:H forward state, H:2H backward state,
    # 2H:Gp zero padding (stays exactly zero through the update equations).
    def step(s, carry):
        h, c = carry
        g = xg_ref[s] + jnp.dot(h, whh, preferred_element_type=jnp.float32)
        sg = jax.nn.sigmoid(g[:, 0:G3])        # i | f | o   (fwd & bwd), one EUP pass
        tg = jnp.tanh(g[:, G3:G4])             # cell candidate (fwd & bwd)
        c = sg[:, Gp:2 * Gp] * c + sg[:, 0:Gp] * tg
        h = sg[:, 2 * Gp:G3] * jnp.tanh(c)
        h_ref[s, :, 0:H] = h[:, 0:H]                     # fwd hidden at time s
        h_ref[S - 1 - s, :, H:2 * H] = h[:, H:2 * H]     # bwd hidden at time S-1-s
        return h, c

    z = jnp.zeros((Bp, Gp), jnp.float32)
    lax.fori_loop(0, S, step, (z, z), unroll=min(S, 8))

    # ---- Stage 3: single lane-dense fc matmul over the whole sequence -----
    h2d = h_ref[...].reshape(S * Bp, Gp)
    out_ref[...] = (jnp.dot(h2d, wfc_ref[...],
                            preferred_element_type=jnp.float32) + bfc_ref[...])


# --------------------------------------------------------------------------
# Wrapper
# --------------------------------------------------------------------------
@functools.partial(jax.jit, static_argnames=("n_classes",))
def rnn_tagger_forward(input_ids, params, *, n_classes):
    # Embedding lookup (glue, plain XLA gather). Dropout is identity at eval.
    x = params["emb"][input_ids].astype(jnp.float32)      # [B, S, E]
    B, S, E = x.shape
    H = params["whh_f"].shape[0]
    C = n_classes
    Bp = _round_up(B, 8)                                  # sublane-dense batch
    Cp = _round_up(C, 128)                                # lane-dense fc output
    Gp = _round_up(2 * H, 128)                            # lane-aligned gate slot

    # time-major, batch-padded; lane-concat x_t with x_{S-1-t} so fwd and bwd
    # input projections become a single matmul with the right per-step rows.
    x_tm = jnp.transpose(x, (1, 0, 2))                    # [S, B, E]
    x_tm = jnp.pad(x_tm, ((0, 0), (0, Bp - B), (0, 0)))   # [S, Bp, E]
    x_cat = jnp.concatenate([x_tm, x_tm[::-1]], axis=-1)  # [S, Bp, 2E]
    x2d = x_cat.reshape(S * Bp, 2 * E)

    # ---- weight layout plumbing (gate reorder, block-diag, lane padding) ----
    def split_gates(w):  # PyTorch gate order along the 4H axis: (i, f, g, o)
        return jnp.split(w, 4, axis=-1)

    i_f, f_f, g_f, o_f = split_gates(params["wih_f"])
    i_b, f_b, g_b, o_b = split_gates(params["wih_b"])
    hi_f, hf_f, hg_f, ho_f = split_gates(params["whh_f"])
    hi_b, hf_b, hg_b, ho_b = split_gates(params["whh_b"])
    bi_f, bf_f, bg_f, bo_f = split_gates(params["b_f"])
    bi_b, bf_b, bg_b, bo_b = split_gates(params["b_b"])

    def ih_block(wf, wb):            # [2E, Gp]
        blk = jnp.zeros((2 * E, Gp), jnp.float32)
        blk = blk.at[:E, 0:H].set(wf)
        blk = blk.at[E:, H:2 * H].set(wb)
        return blk

    def hh_block(wf, wb):            # [Gp, Gp] block-diagonal
        blk = jnp.zeros((Gp, Gp), jnp.float32)
        blk = blk.at[0:H, 0:H].set(wf)
        blk = blk.at[H:2 * H, H:2 * H].set(wb)
        return blk

    def b_block(bf, bb):             # [1, Gp]
        blk = jnp.zeros((1, Gp), jnp.float32)
        blk = blk.at[:, 0:H].set(bf)
        blk = blk.at[:, H:2 * H].set(bb)
        return blk

    # gate-block order (i, f, o, g): sigmoid gates contiguous, tanh block last.
    wih = jnp.concatenate([ih_block(i_f, i_b), ih_block(f_f, f_b),
                           ih_block(o_f, o_b), ih_block(g_f, g_b)], axis=-1)
    whh = jnp.concatenate([hh_block(hi_f, hi_b), hh_block(hf_f, hf_b),
                           hh_block(ho_f, ho_b), hh_block(hg_f, hg_b)], axis=-1)
    b = jnp.concatenate([b_block(bi_f, bi_b), b_block(bf_f, bf_b),
                         b_block(bo_f, bo_b), b_block(bg_f, bg_b)], axis=-1)

    wfc = jnp.zeros((Gp, Cp), jnp.float32).at[:2 * H, :C].set(params["wfc"])
    bfc = jnp.zeros((1, Cp), jnp.float32).at[:, :C].set(params["bfc"])

    # ---- generation-aware VMEM budget --------------------------------------
    need = 4 * (S * Bp * 2 * E + 2 * E * 4 * Gp + 4 * Gp + Gp * 4 * Gp
                + Gp * Cp + Cp + S * Bp * Cp + S * Bp * 4 * Gp + S * Bp * Gp)
    cap = _vmem_capacity_bytes()
    vmem_limit = int(min(max(2 * need, 32 * 1024 * 1024), 0.85 * cap))

    vmem = pl.BlockSpec(memory_space=pltpu.MemorySpace.VMEM)
    out2d = pl.pallas_call(
        functools.partial(lstm_tagger_kernel, hidden_size=H),
        out_shape=jax.ShapeDtypeStruct((S * Bp, Cp), jnp.float32),
        in_specs=[vmem] * 6,
        out_specs=vmem,
        scratch_shapes=[
            pltpu.VMEM((S, Bp, 4 * Gp), jnp.float32),
            pltpu.VMEM((S, Bp, Gp), jnp.float32),
        ],
        compiler_params=pltpu.CompilerParams(vmem_limit_bytes=vmem_limit),
    )(x2d, wih, b, whh, wfc, bfc)

    out = out2d.reshape(S, Bp, Cp)
    out = jnp.transpose(out, (1, 0, 2))[:B, :, :C]         # [B, S, C] batch_first
    return out


# --------------------------------------------------------------------------
# Pure-JAX reference (mirrors torch semantics) for verification
# --------------------------------------------------------------------------
def reference_forward(input_ids, params):
    x = params["emb"][input_ids].astype(jnp.float32)      # [B, S, E]
    B, S, _ = x.shape
    H = params["whh_f"].shape[0]

    def run(wih, whh, b, reverse):
        xs = jnp.transpose(x, (1, 0, 2))                  # [S, B, E]
        if reverse:
            xs = xs[::-1]

        def step(carry, xt):
            h, c = carry
            gates = xt @ wih + h @ whh + b
            i = jax.nn.sigmoid(gates[:, :H])
            f = jax.nn.sigmoid(gates[:, H:2 * H])
            g = jnp.tanh(gates[:, 2 * H:3 * H])
            o = jax.nn.sigmoid(gates[:, 3 * H:])
            c = f * c + i * g
            h = o * jnp.tanh(c)
            return (h, c), h

        (_, _), hs = lax.scan(
            step, (jnp.zeros((B, H)), jnp.zeros((B, H))), xs
        )
        if reverse:
            hs = hs[::-1]
        return hs                                          # [S, B, H]

    hf = run(params["wih_f"], params["whh_f"], params["b_f"], False)
    hb = run(params["wih_b"], params["whh_b"], params["b_b"], True)
    hcat = jnp.concatenate([hf, hb], axis=-1)
    out = jnp.einsum("sbh,hc->sbc", hcat, params["wfc"]) + params["bfc"]
    return jnp.transpose(out, (1, 0, 2))                   # [B, S, C]


# --------------------------------------------------------------------------
# Deterministic parameter construction (shapes from RNNTagger.__init__)
# --------------------------------------------------------------------------
def make_params(key, vocab_size, embedding_dim, padding_idx, hidden_size,
                n_classes):
    keys = jax.random.split(key, 16)
    H, E, C = hidden_size, embedding_dim, n_classes
    k_lstm = 1.0 / math.sqrt(H)
    k_fc = 1.0 / math.sqrt(2 * H)

    def u(k, shape, bound):
        return jax.random.uniform(k, shape, jnp.float32, -bound, bound)

    emb = jax.random.normal(keys[0], (vocab_size, E), jnp.float32)
    emb = emb.at[padding_idx].set(0.0)                     # nn.Embedding padding_idx

    params = {
        "emb": emb,
        # forward direction: PyTorch (4H, E)/(4H, H) stored pre-transposed, (i,f,g,o)
        "wih_f": u(keys[1], (E, 4 * H), k_lstm),
        "whh_f": u(keys[2], (H, 4 * H), k_lstm),
        "b_f": u(keys[3], (1, 4 * H), k_lstm) + u(keys[4], (1, 4 * H), k_lstm),
        # backward direction
        "wih_b": u(keys[5], (E, 4 * H), k_lstm),
        "whh_b": u(keys[6], (H, 4 * H), k_lstm),
        "b_b": u(keys[7], (1, 4 * H), k_lstm) + u(keys[8], (1, 4 * H), k_lstm),
        # fc: Linear(2H -> C), stored pre-transposed
        "wfc": u(keys[9], (2 * H, C), k_fc),
        "bfc": u(keys[10], (1, C), k_fc),
    }
    return params


if __name__ == "__main__":
    # Small config consistent with RNNTagger(rnn='LSTM', bidirectional=True,
    # num_layers=1, dropout identity at eval).
    vocab_size, embedding_dim, padding_idx = 50, 32, 0
    hidden_size, n_classes = 32, 8
    batch, seq = 2, 8

    key = jax.random.PRNGKey(0)
    pkey, dkey = jax.random.split(key)
    params = make_params(pkey, vocab_size, embedding_dim, padding_idx,
                         hidden_size, n_classes)

    input_ids = jax.random.randint(dkey, (batch, seq), 0, vocab_size,
                                   dtype=jnp.int32)

    out = rnn_tagger_forward(input_ids, params, n_classes=n_classes)
    out = jax.block_until_ready(out)

    ref = reference_forward(input_ids, params)
    assert out.shape == (batch, seq, n_classes), out.shape
    assert jnp.allclose(out, ref, atol=1e-4, rtol=1e-4), \
        f"max err {jnp.max(jnp.abs(out - ref))}"

    print("KERNEL_OK")
</pallas_src>

<mosaic_0001>
module attributes {stable_mosaic.version = 11 : i64} {
  func.func @lstm_tagger_kernel(%arg0: memref<64x64xf32, #tpu.memory_space<vmem>>, %arg1: memref<64x512xf32, #tpu.memory_space<vmem>>, %arg2: memref<1x512xf32, #tpu.memory_space<vmem>>, %arg3: memref<128x512xf32, #tpu.memory_space<vmem>>, %arg4: memref<128x128xf32, #tpu.memory_space<vmem>>, %arg5: memref<1x128xf32, #tpu.memory_space<vmem>>, %arg6: memref<64x128xf32, #tpu.memory_space<vmem>>, %arg7: memref<8x8x512xf32, #tpu.memory_space<vmem>>, %arg8: memref<8x8x128xf32, #tpu.memory_space<vmem>>) attributes {dimension_semantics = [], scalar_prefetch = 0 : i64, scratch_operands = 2 : i64, tpu.core_type = #tpu.core_type<tc>} {
    %c0 = arith.constant 0 : index
    %c0_0 = arith.constant 0 : index
    %0 = vector.load %arg0[%c0, %c0_0] : memref<64x64xf32, #tpu.memory_space<vmem>>, vector<64x64xf32>
    %c0_1 = arith.constant 0 : index
    %c0_2 = arith.constant 0 : index
    %1 = vector.load %arg1[%c0_1, %c0_2] : memref<64x512xf32, #tpu.memory_space<vmem>>, vector<64x512xf32>
    %cst = arith.constant dense<0.000000e+00> : vector<64x512xf32>
    %2 = tpu.matmul %0, %1, %cst {dimension_numbers = #tpu.dot_dimension_numbers<[1], [0], [0], [1], [0, 0, 1, 1], [], []>} : vector<64x64xf32>, vector<64x512xf32>, vector<64x512xf32> -> vector<64x512xf32>
    %c0_3 = arith.constant 0 : index
    %c0_4 = arith.constant 0 : index
    %3 = vector.load %arg2[%c0_3, %c0_4] : memref<1x512xf32, #tpu.memory_space<vmem>>, vector<1x512xf32>
    %4 = vector.broadcast %3 : vector<1x512xf32> to vector<64x512xf32>
    %5 = arith.addf %2, %4 : vector<64x512xf32>
    %6 = vector.shape_cast %5 : vector<64x512xf32> to vector<8x8x512xf32>
    %c0_5 = arith.constant 0 : index
    %c0_6 = arith.constant 0 : index
    %c0_7 = arith.constant 0 : index
    %7 = vector.load %arg7[%c0_5, %c0_6, %c0_7] : memref<8x8x512xf32, #tpu.memory_space<vmem>>, vector<8x8x512xf32>
    tpu.vector_store %arg7[%c0_5, %c0_6, %c0_7], %6 {strides = array<i32>} : memref<8x8x512xf32, #tpu.memory_space<vmem>>, vector<8x8x512xf32>,
    %cst_8 = arith.constant 0.000000e+00 : f32
    %8 = vector.broadcast %cst_8 : f32 to vector<8x8x128xf32>
    %c0_9 = arith.constant 0 : index
    %c0_10 = arith.constant 0 : index
    %c0_11 = arith.constant 0 : index
    %9 = vector.load %arg8[%c0_9, %c0_10, %c0_11] : memref<8x8x128xf32, #tpu.memory_space<vmem>>, vector<8x8x128xf32>
    tpu.vector_store %arg8[%c0_9, %c0_10, %c0_11], %8 {strides = array<i32>} : memref<8x8x128xf32, #tpu.memory_space<vmem>>, vector<8x8x128xf32>,
    %c0_12 = arith.constant 0 : index
    %c0_13 = arith.constant 0 : index
    %10 = vector.load %arg3[%c0_12, %c0_13] : memref<128x512xf32, #tpu.memory_space<vmem>>, vector<128x512xf32>
    %cst_14 = arith.constant 0.000000e+00 : f32
    %11 = vector.broadcast %cst_14 : f32 to vector<8x128xf32>
    %c0_i32 = arith.constant 0 : i32
    %12 = arith.index_cast %c0_i32 : i32 to index
    %c0_15 = arith.constant 0 : index
    %c0_16 = arith.constant 0 : index
    %13 = vector.load %arg7[%12, %c0_15, %c0_16] : memref<8x8x512xf32, #tpu.memory_space<vmem>>, vector<1x8x512xf32>
    %14 = vector.shape_cast %13 : vector<1x8x512xf32> to vector<8x512xf32>
    %cst_17 = arith.constant dense<0.000000e+00> : vector<8x512xf32>
    %15 = tpu.matmul %11, %10, %cst_17 {dimension_numbers = #tpu.dot_dimension_numbers<[1], [0], [0], [1], [0, 0, 1, 1], [], []>} : vector<8x128xf32>, vector<128x512xf32>, vector<8x512xf32> -> vector<8x512xf32>
    %16 = arith.addf %14, %15 : vector<8x512xf32>
    %17 = vector.extract_strided_slice %16 {offsets = [0, 0], sizes = [8, 384], strides = [1, 1]} : vector<8x512xf32> to vector<8x384xf32>
    %18 = arith.negf %17 : vector<8x384xf32>
    %19 = math.exp %18 : vector<8x384xf32>
    %cst_18 = arith.constant 1.000000e+00 : f32
    %20 = vector.broadcast %cst_18 : f32 to vector<8x384xf32>
    %21 = arith.addf %20, %19 : vector<8x384xf32>
    %22 = arith.divf %20, %21 : vector<8x384xf32>
    %23 = vector.extract_strided_slice %16 {offsets = [0, 384], sizes = [8, 128], strides = [1, 1]} : vector<8x512xf32> to vector<8x128xf32>
    %24 = math.tanh %23 : vector<8x128xf32>
    %25 = vector.extract_strided_slice %22 {offsets = [0, 128], sizes = [8, 128], strides = [1, 1]} : vector<8x384xf32> to vector<8x128xf32>
    %26 = arith.mulf %25, %11 : vector<8x128xf32>
    %27 = vector.extract_strided_slice %22 {offsets = [0, 0], sizes = [8, 128], strides = [1, 1]} : vector<8x384xf32> to vector<8x128xf32>
    %28 = arith.mulf %27, %24 : vector<8x128xf32>
    %29 = arith.addf %26, %28 : vector<8x128xf32>
    %30 = vector.extract_strided_slice %22 {offsets = [0, 256], sizes = [8, 128], strides = [1, 1]} : vector<8x384xf32> to vector<8x128xf32>
    %31 = math.tanh %29 : vector<8x128xf32>
    %32 = arith.mulf %30, %31 : vector<8x128xf32>
    %33 = vector.extract_strided_slice %32 {offsets = [0, 0], sizes = [8, 32], strides = [1, 1]} : vector<8x128xf32> to vector<8x32xf32>
    %34 = arith.index_cast %c0_i32 : i32 to index
    %c0_19 = arith.constant 0 : index
    %c0_20 = arith.constant 0 : index
    %35 = vector.load %arg8[%34, %c0_19, %c0_20] : memref<8x8x128xf32, #tpu.memory_space<vmem>>, vector<1x8x32xf32>
    %36 = vector.shape_cast %35 : vector<1x8x32xf32> to vector<8x32xf32>
    %37 = vector.shape_cast %33 : vector<8x32xf32> to vector<1x8x32xf32>
    tpu.vector_store %arg8[%34, %c0_19, %c0_20], %37 {strides = array<i32>} : memref<8x8x128xf32, #tpu.memory_space<vmem>>, vector<1x8x32xf32>,
    %38 = vector.extract_strided_slice %32 {offsets = [0, 32], sizes = [8, 32], strides = [1, 1]} : vector<8x128xf32> to vector<8x32xf32>
    %c7_i32 = arith.constant 7 : i32
    %39 = arith.subi %c7_i32, %c0_i32 : i32
    %40 = arith.index_cast %39 : i32 to index
    %c0_21 = arith.constant 0 : index
    %c32 = arith.constant 32 : index
    %41 = vector.load %arg8[%40, %c0_21, %c32] : memref<8x8x128xf32, #tpu.memory_space<vmem>>, vector<1x8x32xf32>
    %42 = vector.shape_cast %41 : vector<1x8x32xf32> to vector<8x32xf32>
    %43 = vector.shape_cast %38 : vector<8x32xf32> to vector<1x8x32xf32>
    tpu.vector_store %arg8[%40, %c0_21, %c32], %43 {strides = array<i32>} : memref<8x8x128xf32, #tpu.memory_space<vmem>>, vector<1x8x32xf32>,
    %c1_i32 = arith.constant 1 : i32
    %44 = arith.index_cast %c1_i32 : i32 to index
    %c0_22 = arith.constant 0 : index
    %c0_23 = arith.constant 0 : index
    %45 = vector.load %arg7[%44, %c0_22, %c0_23] : memref<8x8x512xf32, #tpu.memory_space<vmem>>, vector<1x8x512xf32>
    %46 = vector.shape_cast %45 : vector<1x8x512xf32> to vector<8x512xf32>
    %cst_24 = arith.constant dense<0.000000e+00> : vector<8x512xf32>
    %47 = tpu.matmul %32, %10, %cst_24 {dimension_numbers = #tpu.dot_dimension_numbers<[1], [0], [0], [1], [0, 0, 1, 1], [], []>} : vector<8x128xf32>, vector<128x512xf32>, vector<8x512xf32> -> vector<8x512xf32>
    %48 = arith.addf %46, %47 : vector<8x512xf32>
    %49 = vector.extract_strided_slice %48 {offsets = [0, 0], sizes = [8, 384], strides = [1, 1]} : vector<8x512xf32> to vector<8x384xf32>
    %50 = arith.negf %49 : vector<8x384xf32>
    %51 = math.exp %50 : vector<8x384xf32>
    %cst_25 = arith.constant 1.000000e+00 : f32
    %52 = vector.broadcast %cst_25 : f32 to vector<8x384xf32>
    %53 = arith.addf %52, %51 : vector<8x384xf32>
    %54 = arith.divf %52, %53 : vector<8x384xf32>
    %55 = vector.extract_strided_slice %48 {offsets = [0, 384], sizes = [8, 128], strides = [1, 1]} : vector<8x512xf32> to vector<8x128xf32>
    %56 = math.tanh %55 : vector<8x128xf32>
    %57 = vector.extract_strided_slice %54 {offsets = [0, 128], sizes = [8, 128], strides = [1, 1]} : vector<8x384xf32> to vector<8x128xf32>
    %58 = arith.mulf %57, %29 : vector<8x128xf32>
    %59 = vector.extract_strided_slice %54 {offsets = [0, 0], sizes = [8, 128], strides = [1, 1]} : vector<8x384xf32> to vector<8x128xf32>
    %60 = arith.mulf %59, %56 : vector<8x128xf32>
    %61 = arith.addf %58, %60 : vector<8x128xf32>
    %62 = vector.extract_strided_slice %54 {offsets = [0, 256], sizes = [8, 128], strides = [1, 1]} : vector<8x384xf32> to vector<8x128xf32>
    %63 = math.tanh %61 : vector<8x128xf32>
    %64 = arith.mulf %62, %63 : vector<8x128xf32>
    %65 = vector.extract_strided_slice %64 {offsets = [0, 0], sizes = [8, 32], strides = [1, 1]} : vector<8x128xf32> to vector<8x32xf32>
    %66 = arith.index_cast %c1_i32 : i32 to index
    %c0_26 = arith.constant 0 : index
    %c0_27 = arith.constant 0 : index
    %67 = vector.load %arg8[%66, %c0_26, %c0_27] : memref<8x8x128xf32, #tpu.memory_space<vmem>>, vector<1x8x32xf32>
    %68 = vector.shape_cast %67 : vector<1x8x32xf32> to vector<8x32xf32>
    %69 = vector.shape_cast %65 : vector<8x32xf32> to vector<1x8x32xf32>
    tpu.vector_store %arg8[%66, %c0_26, %c0_27], %69 {strides = array<i32>} : memref<8x8x128xf32, #tpu.memory_space<vmem>>, vector<1x8x32xf32>,
    %70 = vector.extract_strided_slice %64 {offsets = [0, 32], sizes = [8, 32], strides = [1, 1]} : vector<8x128xf32> to vector<8x32xf32>
    %c7_i32_28 = arith.constant 7 : i32
    %71 = arith.subi %c7_i32_28, %c1_i32 : i32
    %72 = arith.index_cast %71 : i32 to index
    %c0_29 = arith.constant 0 : index
    %c32_30 = arith.constant 32 : index
    %73 = vector.load %arg8[%72, %c0_29, %c32_30] : memref<8x8x128xf32, #tpu.memory_space<vmem>>, vector<1x8x32xf32>
    %74 = vector.shape_cast %73 : vector<1x8x32xf32> to vector<8x32xf32>
    %75 = vector.shape_cast %70 : vector<8x32xf32> to vector<1x8x32xf32>
    tpu.vector_store %arg8[%72, %c0_29, %c32_30], %75 {strides = array<i32>} : memref<8x8x128xf32, #tpu.memory_space<vmem>>, vector<1x8x32xf32>,
    %c2_i32 = arith.constant 2 : i32
    %76 = arith.index_cast %c2_i32 : i32 to index
    %c0_31 = arith.constant 0 : index
    %c0_32 = arith.constant 0 : index
    %77 = vector.load %arg7[%76, %c0_31, %c0_32] : memref<8x8x512xf32, #tpu.memory_space<vmem>>, vector<1x8x512xf32>
    %78 = vector.shape_cast %77 : vector<1x8x512xf32> to vector<8x512xf32>
    %cst_33 = arith.constant dense<0.000000e+00> : vector<8x512xf32>
    %79 = tpu.matmul %64, %10, %cst_33 {dimension_numbers = #tpu.dot_dimension_numbers<[1], [0], [0], [1], [0, 0, 1, 1], [], []>} : vector<8x128xf32>, vector<128x512xf32>, vector<8x512xf32> -> vector<8x512xf32>
    %80 = arith.addf %78, %79 : vector<8x512xf32>
    %81 = vector.extract_strided_slice %80 {offsets = [0, 0], sizes = [8, 384], strides = [1, 1]} : vector<8x512xf32> to vector<8x384xf32>
    %82 = arith.negf %81 : vector<8x384xf32>
    %83 = math.exp %82 : vector<8x384xf32>
    %cst_34 = arith.constant 1.000000e+00 : f32
    %84 = vector.broadcast %cst_34 : f32 to vector<8x384xf32>
    %85 = arith.addf %84, %83 : vector<8x384xf32>
    %86 = arith.divf %84, %85 : vector<8x384xf32>
    %87 = vector.extract_strided_slice %80 {offsets = [0, 384], sizes = [8, 128], strides = [1, 1]} : vector<8x512xf32> to vector<8x128xf32>
    %88 = math.tanh %87 : vector<8x128xf32>
    %89 = vector.extract_strided_slice %86 {offsets = [0, 128], sizes = [8, 128], strides = [1, 1]} : vector<8x384xf32> to vector<8x128xf32>
    %90 = arith.mulf %89, %61 : vector<8x128xf32>
    %91 = vector.extract_strided_slice %86 {offsets = [0, 0], sizes = [8, 128], strides = [1, 1]} : vector<8x384xf32> to vector<8x128xf32>
    %92 = arith.mulf %91, %88 : vector<8x128xf32>
    %93 = arith.addf %90, %92 : vector<8x128xf32>
    %94 = vector.extract_strided_slice %86 {offsets = [0, 256], sizes = [8, 128], strides = [1, 1]} : vector<8x384xf32> to vector<8x128xf32>
    %95 = math.tanh %93 : vector<8x128xf32>
    %96 = arith.mulf %94, %95 : vector<8x128xf32>
    %97 = vector.extract_strided_slice %96 {offsets = [0, 0], sizes = [8, 32], strides = [1, 1]} : vector<8x128xf32> to vector<8x32xf32>
    %98 = arith.index_cast %c2_i32 : i32 to index
    %c0_35 = arith.constant 0 : index
    %c0_36 = arith.constant 0 : index
    %99 = vector.load %arg8[%98, %c0_35, %c0_36] : memref<8x8x128xf32, #tpu.memory_space<vmem>>, vector<1x8x32xf32>
    %100 = vector.shape_cast %99 : vector<1x8x32xf32> to vector<8x32xf32>
    %101 = vector.shape_cast %97 : vector<8x32xf32> to vector<1x8x32xf32>
    tpu.vector_store %arg8[%98, %c0_35, %c0_36], %101 {strides = array<i32>} : memref<8x8x128xf32, #tpu.memory_space<vmem>>, vector<1x8x32xf32>,
    %102 = vector.extract_strided_slice %96 {offsets = [0, 32], sizes = [8, 32], strides = [1, 1]} : vector<8x128xf32> to vector<8x32xf32>
    %c7_i32_37 = arith.constant 7 : i32
    %103 = arith.subi %c7_i32_37, %c2_i32 : i32
    %104 = arith.index_cast %103 : i32 to index
    %c0_38 = arith.constant 0 : index
    %c32_39 = arith.constant 32 : index
    %105 = vector.load %arg8[%104, %c0_38, %c32_39] : memref<8x8x128xf32, #tpu.memory_space<vmem>>, vector<1x8x32xf32>
    %106 = vector.shape_cast %105 : vector<1x8x32xf32> to vector<8x32xf32>
    %107 = vector.shape_cast %102 : vector<8x32xf32> to vector<1x8x32xf32>
    tpu.vector_store %arg8[%104, %c0_38, %c32_39], %107 {strides = array<i32>} : memref<8x8x128xf32, #tpu.memory_space<vmem>>, vector<1x8x32xf32>,
    %c3_i32 = arith.constant 3 : i32
    %108 = arith.index_cast %c3_i32 : i32 to index
    %c0_40 = arith.constant 0 : index
    %c0_41 = arith.constant 0 : index
    %109 = vector.load %arg7[%108, %c0_40, %c0_41] : memref<8x8x512xf32, #tpu.memory_space<vmem>>, vector<1x8x512xf32>
    %110 = vector.shape_cast %109 : vector<1x8x512xf32> to vector<8x512xf32>
    %cst_42 = arith.constant dense<0.000000e+00> : vector<8x512xf32>
    %111 = tpu.matmul %96, %10, %cst_42 {dimension_numbers = #tpu.dot_dimension_numbers<[1], [0], [0], [1], [0, 0, 1, 1], [], []>} : vector<8x128xf32>, vector<128x512xf32>, vector<8x512xf32> -> vector<8x512xf32>
    %112 = arith.addf %110, %111 : vector<8x512xf32>
    %113 = vector.extract_strided_slice %112 {offsets = [0, 0], sizes = [8, 384], strides = [1, 1]} : vector<8x512xf32> to vector<8x384xf32>
    %114 = arith.negf %113 : vector<8x384xf32>
    %115 = math.exp %114 : vector<8x384xf32>
    %cst_43 = arith.constant 1.000000e+00 : f32
    %116 = vector.broadcast %cst_43 : f32 to vector<8x384xf32>
    %117 = arith.addf %116, %115 : vector<8x384xf32>
    %118 = arith.divf %116, %117 : vector<8x384xf32>
    %119 = vector.extract_strided_slice %112 {offsets = [0, 384], sizes = [8, 128], strides = [1, 1]} : vector<8x512xf32> to vector<8x128xf32>
    %120 = math.tanh %119 : vector<8x128xf32>
    %121 = vector.extract_strided_slice %118 {offsets = [0, 128], sizes = [8, 128], strides = [1, 1]} : vector<8x384xf32> to vector<8x128xf32>
    %122 = arith.mulf %121, %93 : vector<8x128xf32>
    %123 = vector.extract_strided_slice %118 {offsets = [0, 0], sizes = [8, 128], strides = [1, 1]} : vector<8x384xf32> to vector<8x128xf32>
    %124 = arith.mulf %123, %120 : vector<8x128xf32>
    %125 = arith.addf %122, %124 : vector<8x128xf32>
    %126 = vector.extract_strided_slice %118 {offsets = [0, 256], sizes = [8, 128], strides = [1, 1]} : vector<8x384xf32> to vector<8x128xf32>
    %127 = math.tanh %125 : vector<8x128xf32>
    %128 = arith.mulf %126, %127 : vector<8x128xf32>
    %129 = vector.extract_strided_slice %128 {offsets = [0, 0], sizes = [8, 32], strides = [1, 1]} : vector<8x128xf32> to vector<8x32xf32>
    %130 = arith.index_cast %c3_i32 : i32 to index
    %c0_44 = arith.constant 0 : index
    %c0_45 = arith.constant 0 : index
    %131 = vector.load %arg8[%130, %c0_44, %c0_45] : memref<8x8x128xf32, #tpu.memory_space<vmem>>, vector<1x8x32xf32>
    %132 = vector.shape_cast %131 : vector<1x8x32xf32> to vector<8x32xf32>
    %133 = vector.shape_cast %129 : vector<8x32xf32> to vector<1x8x32xf32>
    tpu.vector_store %arg8[%130, %c0_44, %c0_45], %133 {strides = array<i32>} : memref<8x8x128xf32, #tpu.memory_space<vmem>>, vector<1x8x32xf32>,
    %134 = vector.extract_strided_slice %128 {offsets = [0, 32], sizes = [8, 32], strides = [1, 1]} : vector<8x128xf32> to vector<8x32xf32>
    %c7_i32_46 = arith.constant 7 : i32
    %135 = arith.subi %c7_i32_46, %c3_i32 : i32
    %136 = arith.index_cast %135 : i32 to index
    %c0_47 = arith.constant 0 : index
    %c32_48 = arith.constant 32 : index
    %137 = vector.load %arg8[%136, %c0_47, %c32_48] : memref<8x8x128xf32, #tpu.memory_space<vmem>>, vector<1x8x32xf32>
    %138 = vector.shape_cast %137 : vector<1x8x32xf32> to vector<8x32xf32>
    %139 = vector.shape_cast %134 : vector<8x32xf32> to vector<1x8x32xf32>
    tpu.vector_store %arg8[%136, %c0_47, %c32_48], %139 {strides = array<i32>} : memref<8x8x128xf32, #tpu.memory_space<vmem>>, vector<1x8x32xf32>,
    %c4_i32 = arith.constant 4 : i32
    %140 = arith.index_cast %c4_i32 : i32 to index
    %c0_49 = arith.constant 0 : index
    %c0_50 = arith.constant 0 : index
    %141 = vector.load %arg7[%140, %c0_49, %c0_50] : memref<8x8x512xf32, #tpu.memory_space<vmem>>, vector<1x8x512xf32>
    %142 = vector.shape_cast %141 : vector<1x8x512xf32> to vector<8x512xf32>
    %cst_51 = arith.constant dense<0.000000e+00> : vector<8x512xf32>
    %143 = tpu.matmul %128, %10, %cst_51 {dimension_numbers = #tpu.dot_dimension_numbers<[1], [0], [0], [1], [0, 0, 1, 1], [], []>} : vector<8x128xf32>, vector<128x512xf32>, vector<8x512xf32> -> vector<8x512xf32>
    %144 = arith.addf %142, %143 : vector<8x512xf32>
    %145 = vector.extract_strided_slice %144 {offsets = [0, 0], sizes = [8, 384], strides = [1, 1]} : vector<8x512xf32> to vector<8x384xf32>
    %146 = arith.negf %145 : vector<8x384xf32>
    %147 = math.exp %146 : vector<8x384xf32>
    %cst_52 = arith.constant 1.000000e+00 : f32
    %148 = vector.broadcast %cst_52 : f32 to vector<8x384xf32>
    %149 = arith.addf %148, %147 : vector<8x384xf32>
    %150 = arith.divf %148, %149 : vector<8x384xf32>
    %151 = vector.extract_strided_slice %144 {offsets = [0, 384], sizes = [8, 128], strides = [1, 1]} : vector<8x512xf32> to vector<8x128xf32>
    %152 = math.tanh %151 : vector<8x128xf32>
    %153 = vector.extract_strided_slice %150 {offsets = [0, 128], sizes = [8, 128], strides = [1, 1]} : vector<8x384xf32> to vector<8x128xf32>
    %154 = arith.mulf %153, %125 : vector<8x128xf32>
    %155 = vector.extract_strided_slice %150 {offsets = [0, 0], sizes = [8, 128], strides = [1, 1]} : vector<8x384xf32> to vector<8x128xf32>
    %156 = arith.mulf %155, %152 : vector<8x128xf32>
    %157 = arith.addf %154, %156 : vector<8x128xf32>
    %158 = vector.extract_strided_slice %150 {offsets = [0, 256], sizes = [8, 128], strides = [1, 1]} : vector<8x384xf32> to vector<8x128xf32>
    %159 = math.tanh %157 : vector<8x128xf32>
    %160 = arith.mulf %158, %159 : vector<8x128xf32>
    %161 = vector.extract_strided_slice %160 {offsets = [0, 0], sizes = [8, 32], strides = [1, 1]} : vector<8x128xf32> to vector<8x32xf32>
    %162 = arith.index_cast %c4_i32 : i32 to index
    %c0_53 = arith.constant 0 : index
    %c0_54 = arith.constant 0 : index
    %163 = vector.load %arg8[%162, %c0_53, %c0_54] : memref<8x8x128xf32, #tpu.memory_space<vmem>>, vector<1x8x32xf32>
    %164 = vector.shape_cast %163 : vector<1x8x32xf32> to vector<8x32xf32>
    %165 = vector.shape_cast %161 : vector<8x32xf32> to vector<1x8x32xf32>
    tpu.vector_store %arg8[%162, %c0_53, %c0_54], %165 {strides = array<i32>} : memref<8x8x128xf32, #tpu.memory_space<vmem>>, vector<1x8x32xf32>,
    %166 = vector.extract_strided_slice %160 {offsets = [0, 32], sizes = [8, 32], strides = [1, 1]} : vector<8x128xf32> to vector<8x32xf32>
    %c7_i32_55 = arith.constant 7 : i32
    %167 = arith.subi %c7_i32_55, %c4_i32 : i32
    %168 = arith.index_cast %167 : i32 to index
    %c0_56 = arith.constant 0 : index
    %c32_57 = arith.constant 32 : index
    %169 = vector.load %arg8[%168, %c0_56, %c32_57] : memref<8x8x128xf32, #tpu.memory_space<vmem>>, vector<1x8x32xf32>
    %170 = vector.shape_cast %169 : vector<1x8x32xf32> to vector<8x32xf32>
    %171 = vector.shape_cast %166 : vector<8x32xf32> to vector<1x8x32xf32>
    tpu.vector_store %arg8[%168, %c0_56, %c32_57], %171 {strides = array<i32>} : memref<8x8x128xf32, #tpu.memory_space<vmem>>, vector<1x8x32xf32>,
    %c5_i32 = arith.constant 5 : i32
    %172 = arith.index_cast %c5_i32 : i32 to index
    %c0_58 = arith.constant 0 : index
    %c0_59 = arith.constant 0 : index
    %173 = vector.load %arg7[%172, %c0_58, %c0_59] : memref<8x8x512xf32, #tpu.memory_space<vmem>>, vector<1x8x512xf32>
    %174 = vector.shape_cast %173 : vector<1x8x512xf32> to vector<8x512xf32>
    %cst_60 = arith.constant dense<0.000000e+00> : vector<8x512xf32>
    %175 = tpu.matmul %160, %10, %cst_60 {dimension_numbers = #tpu.dot_dimension_numbers<[1], [0], [0], [1], [0, 0, 1, 1], [], []>} : vector<8x128xf32>, vector<128x512xf32>, vector<8x512xf32> -> vector<8x512xf32>
    %176 = arith.addf %174, %175 : vector<8x512xf32>
    %177 = vector.extract_strided_slice %176 {offsets = [0, 0], sizes = [8, 384], strides = [1, 1]} : vector<8x512xf32> to vector<8x384xf32>
    %178 = arith.negf %177 : vector<8x384xf32>
    %179 = math.exp %178 : vector<8x384xf32>
    %cst_61 = arith.constant 1.000000e+00 : f32
    %180 = vector.broadcast %cst_61 : f32 to vector<8x384xf32>
    %181 = arith.addf %180, %179 : vector<8x384xf32>
    %182 = arith.divf %180, %181 : vector<8x384xf32>
    %183 = vector.extract_strided_slice %176 {offsets = [0, 384], sizes = [8, 128], strides = [1, 1]} : vector<8x512xf32> to vector<8x128xf32>
    %184 = math.tanh %183 : vector<8x128xf32>
    %185 = vector.extract_strided_slice %182 {offsets = [0, 128], sizes = [8, 128], strides = [1, 1]} : vector<8x384xf32> to vector<8x128xf32>
    %186 = arith.mulf %185, %157 : vector<8x128xf32>
    %187 = vector.extract_strided_slice %182 {offsets = [0, 0], sizes = [8, 128], strides = [1, 1]} : vector<8x384xf32> to vector<8x128xf32>
    %188 = arith.mulf %187, %184 : vector<8x128xf32>
    %189 = arith.addf %186, %188 : vector<8x128xf32>
    %190 = vector.extract_strided_slice %182 {offsets = [0, 256], sizes = [8, 128], strides = [1, 1]} : vector<8x384xf32> to vector<8x128xf32>
    %191 = math.tanh %189 : vector<8x128xf32>
    %192 = arith.mulf %190, %191 : vector<8x128xf32>
    %193 = vector.extract_strided_slice %192 {offsets = [0, 0], sizes = [8, 32], strides = [1, 1]} : vector<8x128xf32> to vector<8x32xf32>
    %194 = arith.index_cast %c5_i32 : i32 to index
    %c0_62 = arith.constant 0 : index
    %c0_63 = arith.constant 0 : index
    %195 = vector.load %arg8[%194, %c0_62, %c0_63] : memref<8x8x128xf32, #tpu.memory_space<vmem>>, vector<1x8x32xf32>
    %196 = vector.shape_cast %195 : vector<1x8x32xf32> to vector<8x32xf32>
    %197 = vector.shape_cast %193 : vector<8x32xf32> to vector<1x8x32xf32>
    tpu.vector_store %arg8[%194, %c0_62, %c0_63], %197 {strides = array<i32>} : memref<8x8x128xf32, #tpu.memory_space<vmem>>, vector<1x8x32xf32>,
    %198 = vector.extract_strided_slice %192 {offsets = [0, 32], sizes = [8, 32], strides = [1, 1]} : vector<8x128xf32> to vector<8x32xf32>
    %c7_i32_64 = arith.constant 7 : i32
    %199 = arith.subi %c7_i32_64, %c5_i32 : i32
    %200 = arith.index_cast %199 : i32 to index
    %c0_65 = arith.constant 0 : index
    %c32_66 = arith.constant 32 : index
    %201 = vector.load %arg8[%200, %c0_65, %c32_66] : memref<8x8x128xf32, #tpu.memory_space<vmem>>, vector<1x8x32xf32>
    %202 = vector.shape_cast %201 : vector<1x8x32xf32> to vector<8x32xf32>
    %203 = vector.shape_cast %198 : vector<8x32xf32> to vector<1x8x32xf32>
    tpu.vector_store %arg8[%200, %c0_65, %c32_66], %203 {strides = array<i32>} : memref<8x8x128xf32, #tpu.memory_space<vmem>>, vector<1x8x32xf32>,
    %c6_i32 = arith.constant 6 : i32
    %204 = arith.index_cast %c6_i32 : i32 to index
    %c0_67 = arith.constant 0 : index
    %c0_68 = arith.constant 0 : index
    %205 = vector.load %arg7[%204, %c0_67, %c0_68] : memref<8x8x512xf32, #tpu.memory_space<vmem>>, vector<1x8x512xf32>
    %206 = vector.shape_cast %205 : vector<1x8x512xf32> to vector<8x512xf32>
    %cst_69 = arith.constant dense<0.000000e+00> : vector<8x512xf32>
    %207 = tpu.matmul %192, %10, %cst_69 {dimension_numbers = #tpu.dot_dimension_numbers<[1], [0], [0], [1], [0, 0, 1, 1], [], []>} : vector<8x128xf32>, vector<128x512xf32>, vector<8x512xf32> -> vector<8x512xf32>
    %208 = arith.addf %206, %207 : vector<8x512xf32>
    %209 = vector.extract_strided_slice %208 {offsets = [0, 0], sizes = [8, 384], strides = [1, 1]} : vector<8x512xf32> to vector<8x384xf32>
    %210 = arith.negf %209 : vector<8x384xf32>
    %211 = math.exp %210 : vector<8x384xf32>
    %cst_70 = arith.constant 1.000000e+00 : f32
    %212 = vector.broadcast %cst_70 : f32 to vector<8x384xf32>
    %213 = arith.addf %212, %211 : vector<8x384xf32>
    %214 = arith.divf %212, %213 : vector<8x384xf32>
    %215 = vector.extract_strided_slice %208 {offsets = [0, 384], sizes = [8, 128], strides = [1, 1]} : vector<8x512xf32> to vector<8x128xf32>
    %216 = math.tanh %215 : vector<8x128xf32>
    %217 = vector.extract_strided_slice %214 {offsets = [0, 128], sizes = [8, 128], strides = [1, 1]} : vector<8x384xf32> to vector<8x128xf32>
    %218 = arith.mulf %217, %189 : vector<8x128xf32>
    %219 = vector.extract_strided_slice %214 {offsets = [0, 0], sizes = [8, 128], strides = [1, 1]} : vector<8x384xf32> to vector<8x128xf32>
    %220 = arith.mulf %219, %216 : vector<8x128xf32>
    %221 = arith.addf %218, %220 : vector<8x128xf32>
    %222 = vector.extract_strided_slice %214 {offsets = [0, 256], sizes = [8, 128], strides = [1, 1]} : vector<8x384xf32> to vector<8x128xf32>
    %223 = math.tanh %221 : vector<8x128xf32>
    %224 = arith.mulf %222, %223 : vector<8x128xf32>
    %225 = vector.extract_strided_slice %224 {offsets = [0, 0], sizes = [8, 32], strides = [1, 1]} : vector<8x128xf32> to vector<8x32xf32>
    %226 = arith.index_cast %c6_i32 : i32 to index
    %c0_71 = arith.constant 0 : index
    %c0_72 = arith.constant 0 : index
    %227 = vector.load %arg8[%226, %c0_71, %c0_72] : memref<8x8x128xf32, #tpu.memory_space<vmem>>, vector<1x8x32xf32>
    %228 = vector.shape_cast %227 : vector<1x8x32xf32> to vector<8x32xf32>
    %229 = vector.shape_cast %225 : vector<8x32xf32> to vector<1x8x32xf32>
    tpu.vector_store %arg8[%226, %c0_71, %c0_72], %229 {strides = array<i32>} : memref<8x8x128xf32, #tpu.memory_space<vmem>>, vector<1x8x32xf32>,
    %230 = vector.extract_strided_slice %224 {offsets = [0, 32], sizes = [8, 32], strides = [1, 1]} : vector<8x128xf32> to vector<8x32xf32>
    %c7_i32_73 = arith.constant 7 : i32
    %231 = arith.subi %c7_i32_73, %c6_i32 : i32
    %232 = arith.index_cast %231 : i32 to index
    %c0_74 = arith.constant 0 : index
    %c32_75 = arith.constant 32 : index
    %233 = vector.load %arg8[%232, %c0_74, %c32_75] : memref<8x8x128xf32, #tpu.memory_space<vmem>>, vector<1x8x32xf32>
    %234 = vector.shape_cast %233 : vector<1x8x32xf32> to vector<8x32xf32>
    %235 = vector.shape_cast %230 : vector<8x32xf32> to vector<1x8x32xf32>
    tpu.vector_store %arg8[%232, %c0_74, %c32_75], %235 {strides = array<i32>} : memref<8x8x128xf32, #tpu.memory_space<vmem>>, vector<1x8x32xf32>,
    %c7_i32_76 = arith.constant 7 : i32
    %236 = arith.index_cast %c7_i32_76 : i32 to index
    %c0_77 = arith.constant 0 : index
    %c0_78 = arith.constant 0 : index
    %237 = vector.load %arg7[%236, %c0_77, %c0_78] : memref<8x8x512xf32, #tpu.memory_space<vmem>>, vector<1x8x512xf32>
    %238 = vector.shape_cast %237 : vector<1x8x512xf32> to vector<8x512xf32>
    %cst_79 = arith.constant dense<0.000000e+00> : vector<8x512xf32>
    %239 = tpu.matmul %224, %10, %cst_79 {dimension_numbers = #tpu.dot_dimension_numbers<[1], [0], [0], [1], [0, 0, 1, 1], [], []>} : vector<8x128xf32>, vector<128x512xf32>, vector<8x512xf32> -> vector<8x512xf32>
    %240 = arith.addf %238, %239 : vector<8x512xf32>
    %241 = vector.extract_strided_slice %240 {offsets = [0, 0], sizes = [8, 384], strides = [1, 1]} : vector<8x512xf32> to vector<8x384xf32>
    %242 = arith.negf %241 : vector<8x384xf32>
    %243 = math.exp %242 : vector<8x384xf32>
    %cst_80 = arith.constant 1.000000e+00 : f32
    %244 = vector.broadcast %cst_80 : f32 to vector<8x384xf32>
    %245 = arith.addf %244, %243 : vector<8x384xf32>
    %246 = arith.divf %244, %245 : vector<8x384xf32>
    %247 = vector.extract_strided_slice %240 {offsets = [0, 384], sizes = [8, 128], strides = [1, 1]} : vector<8x512xf32> to vector<8x128xf32>
    %248 = math.tanh %247 : vector<8x128xf32>
    %249 = vector.extract_strided_slice %246 {offsets = [0, 128], sizes = [8, 128], strides = [1, 1]} : vector<8x384xf32> to vector<8x128xf32>
    %250 = arith.mulf %249, %221 : vector<8x128xf32>
    %251 = vector.extract_strided_slice %246 {offsets = [0, 0], sizes = [8, 128], strides = [1, 1]} : vector<8x384xf32> to vector<8x128xf32>
    %252 = arith.mulf %251, %248 : vector<8x128xf32>
    %253 = arith.addf %250, %252 : vector<8x128xf32>
    %254 = vector.extract_strided_slice %246 {offsets = [0, 256], sizes = [8, 128], strides = [1, 1]} : vector<8x384xf32> to vector<8x128xf32>
    %255 = math.tanh %253 : vector<8x128xf32>
    %256 = arith.mulf %254, %255 : vector<8x128xf32>
    %257 = vector.extract_strided_slice %256 {offsets = [0, 0], sizes = [8, 32], strides = [1, 1]} : vector<8x128xf32> to vector<8x32xf32>
    %258 = arith.index_cast %c7_i32_76 : i32 to index
    %c0_81 = arith.constant 0 : index
    %c0_82 = arith.constant 0 : index
    %259 = vector.load %arg8[%258, %c0_81, %c0_82] : memref<8x8x128xf32, #tpu.memory_space<vmem>>, vector<1x8x32xf32>
    %260 = vector.shape_cast %259 : vector<1x8x32xf32> to vector<8x32xf32>
    %261 = vector.shape_cast %257 : vector<8x32xf32> to vector<1x8x32xf32>
    tpu.vector_store %arg8[%258, %c0_81, %c0_82], %261 {strides = array<i32>} : memref<8x8x128xf32, #tpu.memory_space<vmem>>, vector<1x8x32xf32>,
    %262 = vector.extract_strided_slice %256 {offsets = [0, 32], sizes = [8, 32], strides = [1, 1]} : vector<8x128xf32> to vector<8x32xf32>
    %c7_i32_83 = arith.constant 7 : i32
    %263 = arith.subi %c7_i32_83, %c7_i32_76 : i32
    %264 = arith.index_cast %263 : i32 to index
    %c0_84 = arith.constant 0 : index
    %c32_85 = arith.constant 32 : index
    %265 = vector.load %arg8[%264, %c0_84, %c32_85] : memref<8x8x128xf32, #tpu.memory_space<vmem>>, vector<1x8x32xf32>
    %266 = vector.shape_cast %265 : vector<1x8x32xf32> to vector<8x32xf32>
    %267 = vector.shape_cast %262 : vector<8x32xf32> to vector<1x8x32xf32>
    tpu.vector_store %arg8[%264, %c0_84, %c32_85], %267 {strides = array<i32>} : memref<8x8x128xf32, #tpu.memory_space<vmem>>, vector<1x8x32xf32>,
    %c8_i32 = arith.constant 8 : i32
    %c0_86 = arith.constant 0 : index
    %c0_87 = arith.constant 0 : index
    %c0_88 = arith.constant 0 : index
    %268 = vector.load %arg8[%c0_86, %c0_87, %c0_88] : memref<8x8x128xf32, #tpu.memory_space<vmem>>, vector<8x8x128xf32>
    %269 = vector.shape_cast %268 : vector<8x8x128xf32> to vector<64x128xf32>
    %c0_89 = arith.constant 0 : index
    %c0_90 = arith.constant 0 : index
    %270 = vector.load %arg4[%c0_89, %c0_90] : memref<128x128xf32, #tpu.memory_space<vmem>>, vector<128x128xf32>
    %cst_91 = arith.constant dense<0.000000e+00> : vector<64x128xf32>
    %271 = tpu.matmul %269, %270, %cst_91 {dimension_numbers = #tpu.dot_dimension_numbers<[1], [0], [0], [1], [0, 0, 1, 1], [], []>} : vector<64x128xf32>, vector<128x128xf32>, vector<64x128xf32> -> vector<64x128xf32>
    %c0_92 = arith.constant 0 : index
    %c0_93 = arith.constant 0 : index
    %272 = vector.load %arg5[%c0_92, %c0_93] : memref<1x128xf32, #tpu.memory_space<vmem>>, vector<1x128xf32>
    %273 = vector.broadcast %272 : vector<1x128xf32> to vector<64x128xf32>
    %274 = arith.addf %271, %273 : vector<64x128xf32>
    %c0_94 = arith.constant 0 : index
    %c0_95 = arith.constant 0 : index
    %275 = vector.load %arg6[%c0_94, %c0_95] : memref<64x128xf32, #tpu.memory_space<vmem>>, vector<64x128xf32>
    tpu.vector_store %arg6[%c0_94, %c0_95], %274 {strides = array<i32>} : memref<64x128xf32, #tpu.memory_space<vmem>>, vector<64x128xf32>,
    return
  }
}

</mosaic_0001>

<llo_original>
// kernel: rnn_tagger_forward.1
$region0: #{rnn_tagger_forward.1}
  #allocation0 [shape = 'u32[]', space=smem, size = 0x4, offset = 0x4, fixed_abs, tag = 'smem constant byte address 0x4 - core index']
  #allocation1 [shape = 'u32[144,128]{1,0:T(1,128)}', space=vmem, size = 0x12000, scoped, tag = 'internal scratch']
  #allocation2 [shape = 'f32[8,8,512]{2,1,0:T(8,128)}', space=vmem, size = 0x20000, scoped, tag = 'scratch operand']
  #allocation3 [shape = 'f32[8,8,128]{2,1,0:T(8,128)}', space=vmem, size = 0x8000, scoped, tag = 'scratch operand']
  %s0 = inlined_call_operand.vmem [shape: f32[64,64], index: 0, kind: input, shape index: {}]
  %s1 = inlined_call_operand.vmem [shape: f32[64,512], index: 1, kind: input, shape index: {}]
  %s2 = inlined_call_operand.vmem [shape: f32[1,512], index: 2, kind: input, shape index: {}]
  %s3 = inlined_call_operand.vmem [shape: f32[128,512], index: 3, kind: input, shape index: {}]
  %s4 = inlined_call_operand.vmem [shape: f32[128,128], index: 4, kind: input, shape index: {}]
  %s5 = inlined_call_operand.vmem [shape: f32[1,128], index: 5, kind: input, shape index: {}]
  %s6 = inlined_call_operand.vmem [shape: f32[64,128], index: 6, kind: output, shape index: {}]
  %s7 = sld [smem:[#allocation0]]
  $region34: #{rnn_tagger_forward.1} parent=0
    _
  %s9 = ssub.s32 1, %s7
  %s10 = scalar_select 0, %s9, %s7
  // Predicated region
  $region2: #{rnn_tagger_forward.1} parent=0 // pred_check
    _
  $region3: #{rnn_tagger_forward.1} parent=0 // pred_check_branch
    %12 = sbr.rel (0) target = $region5
  $region4: #{rnn_tagger_forward.1} parent=0 // pred_region
    _
  $region5: #{rnn_tagger_forward.1} parent=0 // pred_fallthru
    _
  // Predicated region
  $region6: #{rnn_tagger_forward.1} parent=0 // pred_check
    _
  $region7: #{rnn_tagger_forward.1} parent=0 // pred_check_branch
    %14 = sbr.rel (0) target = $region9
  $region8: #{rnn_tagger_forward.1} parent=0 // pred_region
    _
  $region9: #{rnn_tagger_forward.1} parent=0 // pred_fallthru
    _
  // Predicated region
  $region10: #{rnn_tagger_forward.1} parent=0 // pred_check
    _
  $region11: #{rnn_tagger_forward.1} parent=0 // pred_check_branch
    %16 = sbr.rel (0) target = $region13
  $region12: #{rnn_tagger_forward.1} parent=0 // pred_region
    _
  $region13: #{rnn_tagger_forward.1} parent=0 // pred_fallthru
    _
  // Predicated region
  $region14: #{rnn_tagger_forward.1} parent=0 // pred_check
    _
  $region15: #{rnn_tagger_forward.1} parent=0 // pred_check_branch
    %18 = sbr.rel (0) target = $region17
  $region16: #{rnn_tagger_forward.1} parent=0 // pred_region
    _
  $region17: #{rnn_tagger_forward.1} parent=0 // pred_fallthru
    _
  // Predicated region
  $region18: #{rnn_tagger_forward.1} parent=0 // pred_check
    _
  $region19: #{rnn_tagger_forward.1} parent=0 // pred_check_branch
    %20 = sbr.rel (0) target = $region21
  $region20: #{rnn_tagger_forward.1} parent=0 // pred_region
    _
  $region21: #{rnn_tagger_forward.1} parent=0 // pred_fallthru
    _
  // Predicated region
  $region22: #{rnn_tagger_forward.1} parent=0 // pred_check
    _
  $region23: #{rnn_tagger_forward.1} parent=0 // pred_check_branch
    %22 = sbr.rel (0) target = $region25
  $region24: #{rnn_tagger_forward.1} parent=0 // pred_region
    _
  $region25: #{rnn_tagger_forward.1} parent=0 // pred_fallthru
    _
  %v23 = vld [vmem:[%s0] sm:$0xff]
  %v24 = vld [vmem:[%s0 + $0x8] sm:$0xff]
  %v25 = vld [vmem:[%s0 + $0x10] sm:$0xff]
  %v26 = vld [vmem:[%s0 + $0x18] sm:$0xff]
  %v27 = vld [vmem:[%s0 + $0x20] sm:$0xff]
  %v28 = vld [vmem:[%s0 + $0x28] sm:$0xff]
  %v29 = vld [vmem:[%s0 + $0x30] sm:$0xff]
  %v30 = vld [vmem:[%s0 + $0x38] sm:$0xff]
  %v31 = vld [vmem:[%s1] sm:$0xff]
  %v32 = vld [vmem:[%s1 + $0x8] sm:$0xff]
  %v33 = vld [vmem:[%s1 + $0x10] sm:$0xff]
  %v34 = vld [vmem:[%s1 + $0x18] sm:$0xff]
  %v35 = vld [vmem:[%s1 + $0x20] sm:$0xff]
  %v36 = vld [vmem:[%s1 + $0x28] sm:$0xff]
  %v37 = vld [vmem:[%s1 + $0x30] sm:$0xff]
  %v38 = vld [vmem:[%s1 + $0x38] sm:$0xff]
  %v39 = vld [vmem:[%s1 + $0x40] sm:$0xff]
  %v40 = vld [vmem:[%s1 + $0x48] sm:$0xff]
  %v41 = vld [vmem:[%s1 + $0x50] sm:$0xff]
  %v42 = vld [vmem:[%s1 + $0x58] sm:$0xff]
  %v43 = vld [vmem:[%s1 + $0x60] sm:$0xff]
  %v44 = vld [vmem:[%s1 + $0x68] sm:$0xff]
  %v45 = vld [vmem:[%s1 + $0x70] sm:$0xff]
  %v46 = vld [vmem:[%s1 + $0x78] sm:$0xff]
  %v47 = vld [vmem:[%s1 + $0x80] sm:$0xff]
  %v48 = vld [vmem:[%s1 + $0x88] sm:$0xff]
  %v49 = vld [vmem:[%s1 + $0x90] sm:$0xff]
  %v50 = vld [vmem:[%s1 + $0x98] sm:$0xff]
  %v51 = vld [vmem:[%s1 + $0xa0] sm:$0xff]
  %v52 = vld [vmem:[%s1 + $0xa8] sm:$0xff]
  %v53 = vld [vmem:[%s1 + $0xb0] sm:$0xff]
  %v54 = vld [vmem:[%s1 + $0xb8] sm:$0xff]
  %v55 = vld [vmem:[%s1 + $0xc0] sm:$0xff]
  %v56 = vld [vmem:[%s1 + $0xc8] sm:$0xff]
  %v57 = vld [vmem:[%s1 + $0xd0] sm:$0xff]
  %v58 = vld [vmem:[%s1 + $0xd8] sm:$0xff]
  %v59 = vld [vmem:[%s1 + $0xe0] sm:$0xff]
  %v60 = vld [vmem:[%s1 + $0xe8] sm:$0xff]
  %v61 = vld [vmem:[%s1 + $0xf0] sm:$0xff]
  %v62 = vld [vmem:[%s1 + $0xf8] sm:$0xff]
  %v63 = vld [vmem:[%s2] sm:$0xf]
  %v65 = vlaneseq
  %v66 = vshrl.u32 %v65, 7
  %v67 = vsub.s32 0, %v66
  %v68 = vrot.slane %v63, %v67
  %v69 = vlaneseq
  %v70 = vshrl.u32 %v69, 7
  %v71 = vsub.s32 1, %v70
  %v72 = vrot.slane %v63, %v71
  %v73 = vlaneseq
  %v74 = vshrl.u32 %v73, 7
  %v75 = vsub.s32 2, %v74
  %v76 = vrot.slane %v63, %v75
  %v77 = vlaneseq
  %v78 = vshrl.u32 %v77, 7
  %v79 = vsub.s32 3, %v78
  %v80 = vrot.slane %v63, %v79
  %vm85 = vcmask 523264
  %v87 = vsel %vm85, %v23, 0
  %v90 = vsel %vm85, %v24, 0
  %v93 = vsel %vm85, %v25, 0
  %v96 = vsel %vm85, %v26, 0
  %v99 = vsel %vm85, %v27, 0
  %v102 = vsel %vm85, %v28, 0
  %v105 = vsel %vm85, %v29, 0
  %v108 = vsel %vm85, %v30, 0
  %110 = vmatprep.subr.mxu0 %v32
  %111 = vmatpush1.msra.mxu0 %v31
  %112 = vmatprep.subr.mxu0 %v36
  %113 = vmatpush1.msra.mxu0 %v35
  %114 = vmatprep.subr.mxu0 %v40
  %115 = vmatpush1.msra.mxu0 %v39
  %116 = vmatprep.subr.mxu0 %v44
  %117 = vmatpush1.msra.mxu0 %v43
  %118 = vmatprep.subr.mxu0 %v48
  %119 = vmatpush1.msra.mxu0 %v47
  %120 = vmatprep.subr.mxu0 %v52
  %121 = vmatpush1.msra.mxu0 %v51
  %122 = vmatprep.subr.mxu0 %v56
  %123 = vmatpush1.msra.mxu0 %v55
  %124 = vmatprep.subr.mxu0 %v60
  %125 = vmatpush1.msra.mxu0 %v59
  %126 = vmatprep.subr.mxu0 0.0
  %127 = vmatpush1.msra.mxu0 0.0
  %128 = vmatprep.subr.mxu0 0.0
  %129 = vmatpush1.msra.mxu0 0.0
  %130 = vmatprep.subr.mxu0 0.0
  %131 = vmatpush1.msra.mxu0 0.0
  %132 = vmatprep.subr.mxu0 0.0
  %133 = vmatpush1.msra.mxu0 0.0
  %134 = vmatprep.subr.mxu0 0.0
  %135 = vmatpush1.msra.mxu0 0.0
  %136 = vmatprep.subr.mxu0 0.0
  %137 = vmatpush1.msra.mxu0 0.0
  %138 = vmatprep.subr.mxu0 0.0
  %139 = vmatpush1.msra.mxu0 0.0
  %140 = vmatprep.subr.mxu0 0.0
  %141 = vmatpush1.msra.mxu0 0.0
  %142 = vmatprep.subr.mxu0 0.0
  %143 = vmatpush1.msra.mxu0 0.0
  %144 = vmatprep.subr.mxu0 0.0
  %145 = vmatpush1.msra.mxu0 0.0
  %146 = vmatprep.subr.mxu0 0.0
  %147 = vmatpush1.msra.mxu0 0.0
  %148 = vmatprep.subr.mxu0 0.0
  %149 = vmatpush1.msra.mxu0 0.0
  %150 = vmatprep.subr.mxu0 0.0
  %151 = vmatpush1.msra.mxu0 0.0
  %152 = vmatprep.subr.mxu0 0.0
  %153 = vmatpush1.msra.mxu0 0.0
  %154 = vmatprep.subr.mxu0 0.0
  %155 = vmatpush1.msra.mxu0 0.0
  %156 = vmatprep.subr.mxu0 0.0
  %157 = vmatpush1.msra.mxu0 0.0
  %158 = vmatprep.subr.mxu0 0.0
  %159 = vmatpush1.msra.mxu0 0.0
  %160 = vmatprep.subr.mxu0 0.0
  %161 = vmatpush1.msra.mxu0 0.0
  %162 = vmatprep.subr.mxu0 0.0
  %163 = vmatpush1.msra.mxu0 0.0
  %164 = vmatprep.subr.mxu0 0.0
  %165 = vmatpush1.msra.mxu0 0.0
  %166 = vmatprep.subr.mxu0 0.0
  %167 = vmatpush1.msra.mxu0 0.0
  %168 = vmatprep.subr.mxu0 0.0
  %169 = vmatpush1.msra.mxu0 0.0
  %170 = vmatprep.subr.mxu0 0.0
  %171 = vmatpush1.msra.mxu0 0.0
  %172 = vmatprep.subr.mxu0 0.0
  %173 = vmatpush1.msra.mxu0 0.0
  %174 = vmatprep.mubr.f32.mxu0 0.0
  %175 = vmatmul.mubr.f32.gmra.mrb[0].mxu0 %v87
  %v176 = vpop.f32.mrb[0].mxu0
  %v177 = vadd.f32 %v68, %v176
  %v178 = vpop.f32.mrb[0].mxu0
  %v179 = vadd.f32 %v72, %v178
  %180 = vmatprep.mubr.f32.mxu0 0.0
  %181 = vmatmul.mubr.f32.gmra.mrb[0].mxu0 %v90
  %v182 = vpop.f32.mrb[0].mxu0
  %v183 = vadd.f32 %v68, %v182
  %v184 = vpop.f32.mrb[0].mxu0
  %v185 = vadd.f32 %v72, %v184
  %186 = vmatprep.mubr.f32.mxu0 0.0
  %187 = vmatmul.mubr.f32.gmra.mrb[0].mxu0 %v93
  %v188 = vpop.f32.mrb[0].mxu0
  %v189 = vadd.f32 %v68, %v188
  %v190 = vpop.f32.mrb[0].mxu0
  %v191 = vadd.f32 %v72, %v190
  %192 = vmatprep.mubr.f32.mxu0 0.0
  %193 = vmatmul.mubr.f32.gmra.mrb[0].mxu0 %v96
  %v194 = vpop.f32.mrb[0].mxu0
  %v195 = vadd.f32 %v68, %v194
  %v196 = vpop.f32.mrb[0].mxu0
  %v197 = vadd.f32 %v72, %v196
  %198 = vmatprep.mubr.f32.mxu0 0.0
  %199 = vmatmul.mubr.f32.gmra.mrb[0].mxu0 %v99
  %v200 = vpop.f32.mrb[0].mxu0
  %v201 = vadd.f32 %v68, %v200
  %v202 = vpop.f32.mrb[0].mxu0
  %v203 = vadd.f32 %v72, %v202
  %204 = vmatprep.mubr.f32.mxu0 0.0
  %205 = vmatmul.mubr.f32.gmra.mrb[0].mxu0 %v102
  %v206 = vpop.f32.mrb[0].mxu0
  %v207 = vadd.f32 %v68, %v206
  %v208 = vpop.f32.mrb[0].mxu0
  %v209 = vadd.f32 %v72, %v208
  %210 = vmatprep.mubr.f32.mxu0 0.0
  %211 = vmatmul.mubr.f32.gmra.mrb[0].mxu0 %v105
  %v212 = vpop.f32.mrb[0].mxu0
  %v213 = vadd.f32 %v68, %v212
  %v214 = vpop.f32.mrb[0].mxu0
  %v215 = vadd.f32 %v72, %v214
  %216 = vmatprep.mubr.f32.mxu0 0.0
  %217 = vmatmul.mubr.f32.gmra.mrb[0].mxu0 %v108
  %v218 = vpop.f32.mrb[0].mxu0
  %v219 = vadd.f32 %v68, %v218
  %v220 = vpop.f32.mrb[0].mxu0
  %v221 = vadd.f32 %v72, %v220
  %222 = vdwg.mxu0
  %223 = vmatprep.subr.mxu0 %v34
  %224 = vmatpush1.msra.mxu0 %v33
  %225 = vmatprep.subr.mxu0 %v38
  %226 = vmatpush1.msra.mxu0 %v37
  %227 = vmatprep.subr.mxu0 %v42
  %228 = vmatpush1.msra.mxu0 %v41
  %229 = vmatprep.subr.mxu0 %v46
  %230 = vmatpush1.msra.mxu0 %v45
  %231 = vmatprep.subr.mxu0 %v50
  %232 = vmatpush1.msra.mxu0 %v49
  %233 = vmatprep.subr.mxu0 %v54
  %234 = vmatpush1.msra.mxu0 %v53
  %235 = vmatprep.subr.mxu0 %v58
  %236 = vmatpush1.msra.mxu0 %v57
  %237 = vmatprep.subr.mxu0 %v62
  %238 = vmatpush1.msra.mxu0 %v61
  %239 = vmatprep.subr.mxu0 0.0
  %240 = vmatpush1.msra.mxu0 0.0
  %241 = vmatprep.subr.mxu0 0.0
  %242 = vmatpush1.msra.mxu0 0.0
  %243 = vmatprep.subr.mxu0 0.0
  %244 = vmatpush1.msra.mxu0 0.0
  %245 = vmatprep.subr.mxu0 0.0
  %246 = vmatpush1.msra.mxu0 0.0
  %247 = vmatprep.subr.mxu0 0.0
  %248 = vmatpush1.msra.mxu0 0.0
  %249 = vmatprep.subr.mxu0 0.0
  %250 = vmatpush1.msra.mxu0 0.0
  %251 = vmatprep.subr.mxu0 0.0
  %252 = vmatpush1.msra.mxu0 0.0
  %253 = vmatprep.subr.mxu0 0.0
  %254 = vmatpush1.msra.mxu0 0.0
  %255 = vmatprep.subr.mxu0 0.0
  %256 = vmatpush1.msra.mxu0 0.0
  %257 = vmatprep.subr.mxu0 0.0
  %258 = vmatpush1.msra.mxu0 0.0
  %259 = vmatprep.subr.mxu0 0.0
  %260 = vmatpush1.msra.mxu0 0.0
  %261 = vmatprep.subr.mxu0 0.0
  %262 = vmatpush1.msra.mxu0 0.0
  %263 = vmatprep.subr.mxu0 0.0
  %264 = vmatpush1.msra.mxu0 0.0
  %265 = vmatprep.subr.mxu0 0.0
  %266 = vmatpush1.msra.mxu0 0.0
  %267 = vmatprep.subr.mxu0 0.0
  %268 = vmatpush1.msra.mxu0 0.0
  %269 = vmatprep.subr.mxu0 0.0
  %270 = vmatpush1.msra.mxu0 0.0
  %271 = vmatprep.subr.mxu0 0.0
  %272 = vmatpush1.msra.mxu0 0.0
  %273 = vmatprep.subr.mxu0 0.0
  %274 = vmatpush1.msra.mxu0 0.0
  %275 = vmatprep.subr.mxu0 0.0
  %276 = vmatpush1.msra.mxu0 0.0
  %277 = vmatprep.subr.mxu0 0.0
  %278 = vmatpush1.msra.mxu0 0.0
  %279 = vmatprep.subr.mxu0 0.0
  %280 = vmatpush1.msra.mxu0 0.0
  %281 = vmatprep.subr.mxu0 0.0
  %282 = vmatpush1.msra.mxu0 0.0
  %283 = vmatprep.subr.mxu0 0.0
  %284 = vmatpush1.msra.mxu0 0.0
  %285 = vmatprep.subr.mxu0 0.0
  %286 = vmatpush1.msra.mxu0 0.0
  %287 = vmatprep.mubr.f32.mxu0 0.0
  %288 = vmatmul.mubr.f32.gmra.mrb[0].mxu0 %v87
  %v289 = vpop.f32.mrb[0].mxu0
  %v290 = vadd.f32 %v76, %v289
  %v291 = vpop.f32.mrb[0].mxu0
  %v292 = vadd.f32 %v80, %v291
  %293 = vmatprep.mubr.f32.mxu0 0.0
  %294 = vmatmul.mubr.f32.gmra.mrb[0].mxu0 %v90
  %v295 = vpop.f32.mrb[0].mxu0
  %v296 = vadd.f32 %v76, %v295
  %v297 = vpop.f32.mrb[0].mxu0
  %v298 = vadd.f32 %v80, %v297
  %299 = vmatprep.mubr.f32.mxu0 0.0
  %300 = vmatmul.mubr.f32.gmra.mrb[0].mxu0 %v93
  %v301 = vpop.f32.mrb[0].mxu0
  %v302 = vadd.f32 %v76, %v301
  %v303 = vpop.f32.mrb[0].mxu0
  %v304 = vadd.f32 %v80, %v303
  %305 = vmatprep.mubr.f32.mxu0 0.0
  %306 = vmatmul.mubr.f32.gmra.mrb[0].mxu0 %v96
  %v307 = vpop.f32.mrb[0].mxu0
  %v308 = vadd.f32 %v76, %v307
  %v309 = vpop.f32.mrb[0].mxu0
  %v310 = vadd.f32 %v80, %v309
  %311 = vmatprep.mubr.f32.mxu0 0.0
  %312 = vmatmul.mubr.f32.gmra.mrb[0].mxu0 %v99
  %v313 = vpop.f32.mrb[0].mxu0
  %v314 = vadd.f32 %v76, %v313
  %v315 = vpop.f32.mrb[0].mxu0
  %v316 = vadd.f32 %v80, %v315
  %317 = vmatprep.mubr.f32.mxu0 0.0
  %318 = vmatmul.mubr.f32.gmra.mrb[0].mxu0 %v102
  %v319 = vpop.f32.mrb[0].mxu0
  %v320 = vadd.f32 %v76, %v319
  %v321 = vpop.f32.mrb[0].mxu0
  %v322 = vadd.f32 %v80, %v321
  %323 = vmatprep.mubr.f32.mxu0 0.0
  %324 = vmatmul.mubr.f32.gmra.mrb[0].mxu0 %v105
  %v325 = vpop.f32.mrb[0].mxu0
  %v326 = vadd.f32 %v76, %v325
  %v327 = vpop.f32.mrb[0].mxu0
  %v328 = vadd.f32 %v80, %v327
  %329 = vmatprep.mubr.f32.mxu0 0.0
  %330 = vmatmul.mubr.f32.gmra.mrb[0].mxu0 %v108
  %v331 = vpop.f32.mrb[0].mxu0
  %v332 = vadd.f32 %v76, %v331
  %v333 = vpop.f32.mrb[0].mxu0
  %v334 = vadd.f32 %v80, %v333
  %335 = vdwg.mxu0
  %336 = vst [vmem:[#allocation2] sm:$0xff] %v177
  %337 = vst [vmem:[#allocation2 + $0x8] sm:$0xff] %v179
  %338 = vst [vmem:[#allocation2 + $0x10] sm:$0xff] %v290
  %339 = vst [vmem:[#allocation2 + $0x18] sm:$0xff] %v292
  %340 = vst [vmem:[#allocation2 + $0x20] sm:$0xff] %v183
  %341 = vst [vmem:[#allocation2 + $0x28] sm:$0xff] %v185
  %342 = vst [vmem:[#allocation2 + $0x30] sm:$0xff] %v296
  %343 = vst [vmem:[#allocation2 + $0x38] sm:$0xff] %v298
  %344 = vst [vmem:[#allocation2 + $0x40] sm:$0xff] %v189
  %345 = vst [vmem:[#allocation2 + $0x48] sm:$0xff] %v191
  %346 = vst [vmem:[#allocation2 + $0x50] sm:$0xff] %v302
  %347 = vst [vmem:[#allocation2 + $0x58] sm:$0xff] %v304
  %348 = vst [vmem:[#allocation2 + $0x60] sm:$0xff] %v195
  %349 = vst [vmem:[#allocation2 + $0x68] sm:$0xff] %v197
  %350 = vst [vmem:[#allocation2 + $0x70] sm:$0xff] %v308
  %351 = vst [vmem:[#allocation2 + $0x78] sm:$0xff] %v310
  %352 = vst [vmem:[#allocation2 + $0x80] sm:$0xff] %v201
  %353 = vst [vmem:[#allocation2 + $0x88] sm:$0xff] %v203
  %354 = vst [vmem:[#allocation2 + $0x90] sm:$0xff] %v314
  %355 = vst [vmem:[#allocation2 + $0x98] sm:$0xff] %v316
  %356 = vst [vmem:[#allocation2 + $0xa0] sm:$0xff] %v207
  %357 = vst [vmem:[#allocation2 + $0xa8] sm:$0xff] %v209
  %358 = vst [vmem:[#allocation2 + $0xb0] sm:$0xff] %v320
  %359 = vst [vmem:[#allocation2 + $0xb8] sm:$0xff] %v322
  %360 = vst [vmem:[#allocation2 + $0xc0] sm:$0xff] %v213
  %361 = vst [vmem:[#allocation2 + $0xc8] sm:$0xff] %v215
  %362 = vst [vmem:[#allocation2 + $0xd0] sm:$0xff] %v326
  %363 = vst [vmem:[#allocation2 + $0xd8] sm:$0xff] %v328
  %364 = vst [vmem:[#allocation2 + $0xe0] sm:$0xff] %v219
  %365 = vst [vmem:[#allocation2 + $0xe8] sm:$0xff] %v221
  %366 = vst [vmem:[#allocation2 + $0xf0] sm:$0xff] %v332
  %367 = vst [vmem:[#allocation2 + $0xf8] sm:$0xff] %v334
  %368 = vst [vmem:[#allocation3] sm:$0xff] 0.0
  %369 = vst [vmem:[#allocation3 + $0x8] sm:$0xff] 0.0
  %370 = vst [vmem:[#allocation3 + $0x10] sm:$0xff] 0.0
  %371 = vst [vmem:[#allocation3 + $0x18] sm:$0xff] 0.0
  %372 = vst [vmem:[#allocation3 + $0x20] sm:$0xff] 0.0
  %373 = vst [vmem:[#allocation3 + $0x28] sm:$0xff] 0.0
  %374 = vst [vmem:[#allocation3 + $0x30] sm:$0xff] 0.0
  %375 = vst [vmem:[#allocation3 + $0x38] sm:$0xff] 0.0
  %v376 = vld [vmem:[%s3] sm:$0xff]
  %v377 = vld [vmem:[%s3 + $0x8] sm:$0xff]
  %v378 = vld [vmem:[%s3 + $0x10] sm:$0xff]
  %v379 = vld [vmem:[%s3 + $0x18] sm:$0xff]
  %v380 = vld [vmem:[%s3 + $0x20] sm:$0xff]
  %v381 = vld [vmem:[%s3 + $0x28] sm:$0xff]
  %v382 = vld [vmem:[%s3 + $0x30] sm:$0xff]
  %v383 = vld [vmem:[%s3 + $0x38] sm:$0xff]
  %v384 = vld [vmem:[%s3 + $0x40] sm:$0xff]
  %v385 = vld [vmem:[%s3 + $0x48] sm:$0xff]
  %v386 = vld [vmem:[%s3 + $0x50] sm:$0xff]
  %v387 = vld [vmem:[%s3 + $0x58] sm:$0xff]
  %v388 = vld [vmem:[%s3 + $0x60] sm:$0xff]
  %v389 = vld [vmem:[%s3 + $0x68] sm:$0xff]
  %v390 = vld [vmem:[%s3 + $0x70] sm:$0xff]
  %v391 = vld [vmem:[%s3 + $0x78] sm:$0xff]
  %v392 = vld [vmem:[%s3 + $0x80] sm:$0xff]
  %v393 = vld [vmem:[%s3 + $0x88] sm:$0xff]
  %v394 = vld [vmem:[%s3 + $0x90] sm:$0xff]
  %v395 = vld [vmem:[%s3 + $0x98] sm:$0xff]
  %v396 = vld [vmem:[%s3 + $0xa0] sm:$0xff]
  %v397 = vld [vmem:[%s3 + $0xa8] sm:$0xff]
  %v398 = vld [vmem:[%s3 + $0xb0] sm:$0xff]
  %v399 = vld [vmem:[%s3 + $0xb8] sm:$0xff]
  %v400 = vld [vmem:[%s3 + $0xc0] sm:$0xff]
  %v401 = vld [vmem:[%s3 + $0xc8] sm:$0xff]
  %v402 = vld [vmem:[%s3 + $0xd0] sm:$0xff]
  %v403 = vld [vmem:[%s3 + $0xd8] sm:$0xff]
  %v404 = vld [vmem:[%s3 + $0xe0] sm:$0xff]
  %v405 = vld [vmem:[%s3 + $0xe8] sm:$0xff]
  %v406 = vld [vmem:[%s3 + $0xf0] sm:$0xff]
  %v407 = vld [vmem:[%s3 + $0xf8] sm:$0xff]
  %v408 = vld [vmem:[%s3 + $0x100] sm:$0xff]
  %v409 = vld [vmem:[%s3 + $0x108] sm:$0xff]
  %v410 = vld [vmem:[%s3 + $0x110] sm:$0xff]
  %v411 = vld [vmem:[%s3 + $0x118] sm:$0xff]
  %v412 = vld [vmem:[%s3 + $0x120] sm:$0xff]
  %v413 = vld [vmem:[%s3 + $0x128] sm:$0xff]
  %v414 = vld [vmem:[%s3 + $0x130] sm:$0xff]
  %v415 = vld [vmem:[%s3 + $0x138] sm:$0xff]
  %v416 = vld [vmem:[%s3 + $0x140] sm:$0xff]
  %v417 = vld [vmem:[%s3 + $0x148] sm:$0xff]
  %v418 = vld [vmem:[%s3 + $0x150] sm:$0xff]
  %v419 = vld [vmem:[%s3 + $0x158] sm:$0xff]
  %v420 = vld [vmem:[%s3 + $0x160] sm:$0xff]
  %v421 = vld [vmem:[%s3 + $0x168] sm:$0xff]
  %v422 = vld [vmem:[%s3 + $0x170] sm:$0xff]
  %v423 = vld [vmem:[%s3 + $0x178] sm:$0xff]
  %v424 = vld [vmem:[%s3 + $0x180] sm:$0xff]
  %v425 = vld [vmem:[%s3 + $0x188] sm:$0xff]
  %v426 = vld [vmem:[%s3 + $0x190] sm:$0xff]
  %v427 = vld [vmem:[%s3 + $0x198] sm:$0xff]
  %v428 = vld [vmem:[%s3 + $0x1a0] sm:$0xff]
  %v429 = vld [vmem:[%s3 + $0x1a8] sm:$0xff]
  %v430 = vld [vmem:[%s3 + $0x1b0] sm:$0xff]
  %v431 = vld [vmem:[%s3 + $0x1b8] sm:$0xff]
  %v432 = vld [vmem:[%s3 + $0x1c0] sm:$0xff]
  %v433 = vld [vmem:[%s3 + $0x1c8] sm:$0xff]
  %v434 = vld [vmem:[%s3 + $0x1d0] sm:$0xff]
  %v435 = vld [vmem:[%s3 + $0x1d8] sm:$0xff]
  %v436 = vld [vmem:[%s3 + $0x1e0] sm:$0xff]
  %v437 = vld [vmem:[%s3 + $0x1e8] sm:$0xff]
  %v438 = vld [vmem:[%s3 + $0x1f0] sm:$0xff]
  %v439 = vld [vmem:[%s3 + $0x1f8] sm:$0xff]
  %v440 = vld [vmem:[#allocation2] sm:$0xff]
  %v441 = vld [vmem:[#allocation2 + $0x8] sm:$0xff]
  %v442 = vld [vmem:[#allocation2 + $0x10] sm:$0xff]
  %v443 = vld [vmem:[#allocation2 + $0x18] sm:$0xff]
  %444 = vmatprep.subr.mxu0 %v377
  %445 = vmatpush1.msra.mxu0 %v376
  %446 = vmatprep.subr.mxu0 %v381
  %447 = vmatpush1.msra.mxu0 %v380
  %448 = vmatprep.subr.mxu0 %v385
  %449 = vmatpush1.msra.mxu0 %v384
  %450 = vmatprep.subr.mxu0 %v389
  %451 = vmatpush1.msra.mxu0 %v388
  %452 = vmatprep.subr.mxu0 %v393
  %453 = vmatpush1.msra.mxu0 %v392
  %454 = vmatprep.subr.mxu0 %v397
  %455 = vmatpush1.msra.mxu0 %v396
  %456 = vmatprep.subr.mxu0 %v401
  %457 = vmatpush1.msra.mxu0 %v400
  %458 = vmatprep.subr.mxu0 %v405
  %459 = vmatpush1.msra.mxu0 %v404
  %460 = vmatprep.subr.mxu0 %v409
  %461 = vmatpush1.msra.mxu0 %v408
  %462 = vmatprep.subr.mxu0 %v413
  %463 = vmatpush1.msra.mxu0 %v412
  %464 = vmatprep.subr.mxu0 %v417
  %465 = vmatpush1.msra.mxu0 %v416
  %466 = vmatprep.subr.mxu0 %v421
  %467 = vmatpush1.msra.mxu0 %v420
  %468 = vmatprep.subr.mxu0 %v425
  %469 = vmatpush1.msra.mxu0 %v424
  %470 = vmatprep.subr.mxu0 %v429
  %471 = vmatpush1.msra.mxu0 %v428
  %472 = vmatprep.subr.mxu0 %v433
  %473 = vmatpush1.msra.mxu0 %v432
  %474 = vmatprep.subr.mxu0 %v437
  %475 = vmatpush1.msra.mxu0 %v436
  %476 = vmatprep.subr.mxu0 0.0
  %477 = vmatpush1.msra.mxu0 0.0
  %478 = vmatprep.subr.mxu0 0.0
  %479 = vmatpush1.msra.mxu0 0.0
  %480 = vmatprep.subr.mxu0 0.0
  %481 = vmatpush1.msra.mxu0 0.0
  %482 = vmatprep.subr.mxu0 0.0
  %483 = vmatpush1.msra.mxu0 0.0
  %484 = vmatprep.subr.mxu0 0.0
  %485 = vmatpush1.msra.mxu0 0.0
  %486 = vmatprep.subr.mxu0 0.0
  %487 = vmatpush1.msra.mxu0 0.0
  %488 = vmatprep.subr.mxu0 0.0
  %489 = vmatpush1.msra.mxu0 0.0
  %490 = vmatprep.subr.mxu0 0.0
  %491 = vmatpush1.msra.mxu0 0.0
  %492 = vmatprep.subr.mxu0 0.0
  %493 = vmatpush1.msra.mxu0 0.0
  %494 = vmatprep.subr.mxu0 0.0
  %495 = vmatpush1.msra.mxu0 0.0
  %496 = vmatprep.subr.mxu0 0.0
  %497 = vmatpush1.msra.mxu0 0.0
  %498 = vmatprep.subr.mxu0 0.0
  %499 = vmatpush1.msra.mxu0 0.0
  %500 = vmatprep.subr.mxu0 0.0
  %501 = vmatpush1.msra.mxu0 0.0
  %502 = vmatprep.subr.mxu0 0.0
  %503 = vmatpush1.msra.mxu0 0.0
  %504 = vmatprep.subr.mxu0 0.0
  %505 = vmatpush1.msra.mxu0 0.0
  %506 = vmatprep.subr.mxu0 0.0
  %507 = vmatpush1.msra.mxu0 0.0
  %508 = vmatprep.mubr.f32.mxu0 0.0
  %509 = vmatmul.mubr.f32.gmra.mrb[0].mxu0 0.0
  %v510 = vpop.f32.mrb[0].mxu0
  %v511 = vadd.f32 0.0, %v510
  %v512 = vpop.f32.mrb[0].mxu0
  %v513 = vadd.f32 0.0, %v512
  %514 = vdwg.mxu0
  %515 = vmatprep.subr.mxu0 %v379
  %516 = vmatpush1.msra.mxu0 %v378
  %517 = vmatprep.subr.mxu0 %v383
  %518 = vmatpush1.msra.mxu0 %v382
  %519 = vmatprep.subr.mxu0 %v387
  %520 = vmatpush1.msra.mxu0 %v386
  %521 = vmatprep.subr.mxu0 %v391
  %522 = vmatpush1.msra.mxu0 %v390
  %523 = vmatprep.subr.mxu0 %v395
  %524 = vmatpush1.msra.mxu0 %v394
  %525 = vmatprep.subr.mxu0 %v399
  %526 = vmatpush1.msra.mxu0 %v398
  %527 = vmatprep.subr.mxu0 %v403
  %528 = vmatpush1.msra.mxu0 %v402
  %529 = vmatprep.subr.mxu0 %v407
  %530 = vmatpush1.msra.mxu0 %v406
  %531 = vmatprep.subr.mxu0 %v411
  %532 = vmatpush1.msra.mxu0 %v410
  %533 = vmatprep.subr.mxu0 %v415
  %534 = vmatpush1.msra.mxu0 %v414
  %535 = vmatprep.subr.mxu0 %v419
  %536 = vmatpush1.msra.mxu0 %v418
  %537 = vmatprep.subr.mxu0 %v423
  %538 = vmatpush1.msra.mxu0 %v422
  %539 = vmatprep.subr.mxu0 %v427
  %540 = vmatpush1.msra.mxu0 %v426
  %541 = vmatprep.subr.mxu0 %v431
  %542 = vmatpush1.msra.mxu0 %v430
  %543 = vmatprep.subr.mxu0 %v435
  %544 = vmatpush1.msra.mxu0 %v434
  %545 = vmatprep.subr.mxu0 %v439
  %546 = vmatpush1.msra.mxu0 %v438
  %547 = vmatprep.subr.mxu0 0.0
  %548 = vmatpush1.msra.mxu0 0.0
  %549 = vmatprep.subr.mxu0 0.0
  %550 = vmatpush1.msra.mxu0 0.0
  %551 = vmatprep.subr.mxu0 0.0
  %552 = vmatpush1.msra.mxu0 0.0
  %553 = vmatprep.subr.mxu0 0.0
  %554 = vmatpush1.msra.mxu0 0.0
  %555 = vmatprep.subr.mxu0 0.0
  %556 = vmatpush1.msra.mxu0 0.0
  %557 = vmatprep.subr.mxu0 0.0
  %558 = vmatpush1.msra.mxu0 0.0
  %559 = vmatprep.subr.mxu0 0.0
  %560 = vmatpush1.msra.mxu0 0.0
  %561 = vmatprep.subr.mxu0 0.0
  %562 = vmatpush1.msra.mxu0 0.0
  %563 = vmatprep.subr.mxu0 0.0
  %564 = vmatpush1.msra.mxu0 0.0
  %565 = vmatprep.subr.mxu0 0.0
  %566 = vmatpush1.msra.mxu0 0.0
  %567 = vmatprep.subr.mxu0 0.0
  %568 = vmatpush1.msra.mxu0 0.0
  %569 = vmatprep.subr.mxu0 0.0
  %570 = vmatpush1.msra.mxu0 0.0
  %571 = vmatprep.subr.mxu0 0.0
  %572 = vmatpush1.msra.mxu0 0.0
  %573 = vmatprep.subr.mxu0 0.0
  %574 = vmatpush1.msra.mxu0 0.0
  %575 = vmatprep.subr.mxu0 0.0
  %576 = vmatpush1.msra.mxu0 0.0
  %577 = vmatprep.subr.mxu0 0.0
  %578 = vmatpush1.msra.mxu0 0.0
  %579 = vmatprep.mubr.f32.mxu0 0.0
  %580 = vmatmul.mubr.f32.gmra.mrb[0].mxu0 0.0
  %v581 = vpop.f32.mrb[0].mxu0
  %v582 = vadd.f32 0.0, %v581
  %v583 = vpop.f32.mrb[0].mxu0
  %v584 = vadd.f32 0.0, %v583
  %585 = vdwg.mxu0
  %v586 = vadd.f32 %v440, %v511
  %v587 = vadd.f32 %v441, %v513
  %v588 = vadd.f32 %v442, %v582
  %v589 = vadd.f32 %v443, %v584
  %v590 = vxor.u32 %v586, 2147483648
  %v591 = vxor.u32 %v587, 2147483648
  %v592 = vxor.u32 %v588, 2147483648
  %v593 = vmul.f32 %v590, 1.442695
  %v594 = vpow.pop %v593
  %v595 = vmul.f32 %v591, 1.442695
  %v596 = vpow.pop %v595
  %v597 = vmul.f32 %v592, 1.442695
  %v598 = vpow.pop %v597
  %v599 = vadd.f32 %v594, 1.0
  %v600 = vadd.f32 %v596, 1.0
  %v601 = vadd.f32 %v598, 1.0
  %v602 = vrcp.pop %v599
  %v603 = vmul.f32 1.0, %v602
  %v604 = vrcp.pop %v600
  %v605 = vmul.f32 1.0, %v604
  %v606 = vrcp.pop %v601
  %v607 = vmul.f32 1.0, %v606
  %v608 = vtanh.pop %v589
  %v609 = vmul.f32 %v605, 0.0
  %v610 = vmul.f32 %v603, %v608
  %v611 = vadd.f32 %v609, %v610
  %v612 = vtanh.pop %v611
  %v613 = vmul.f32 %v607, %v612
  %vm614 = vcmask 261120
  %615 = vst.msk [vmem:[#allocation3] sm:$0xff] %vm614, %v613
  %s616 = scalar_lea.vmem [#allocation3], 56
  %vm617 = vcmask 523520
  %618 = vst.msk [vmem:[%s616] sm:$0xff] %vm617, %v613
  %s619 = scalar_lea.vmem [#allocation2], 32
  %v620 = vld [vmem:[%s619] sm:$0xff]
  %v621 = vld [vmem:[%s619 + $0x8] sm:$0xff]
  %v622 = vld [vmem:[%s619 + $0x10] sm:$0xff]
  %v623 = vld [vmem:[%s619 + $0x18] sm:$0xff]
  %624 = vmatprep.subr.mxu0 %v377
  %625 = vmatpush1.msra.mxu0 %v376
  %626 = vmatprep.subr.mxu0 %v381
  %627 = vmatpush1.msra.mxu0 %v380
  %628 = vmatprep.subr.mxu0 %v385
  %629 = vmatpush1.msra.mxu0 %v384
  %630 = vmatprep.subr.mxu0 %v389
  %631 = vmatpush1.msra.mxu0 %v388
  %632 = vmatprep.subr.mxu0 %v393
  %633 = vmatpush1.msra.mxu0 %v392
  %634 = vmatprep.subr.mxu0 %v397
  %635 = vmatpush1.msra.mxu0 %v396
  %636 = vmatprep.subr.mxu0 %v401
  %637 = vmatpush1.msra.mxu0 %v400
  %638 = vmatprep.subr.mxu0 %v405
  %639 = vmatpush1.msra.mxu0 %v404
  %640 = vmatprep.subr.mxu0 %v409
  %641 = vmatpush1.msra.mxu0 %v408
  %642 = vmatprep.subr.mxu0 %v413
  %643 = vmatpush1.msra.mxu0 %v412
  %644 = vmatprep.subr.mxu0 %v417
  %645 = vmatpush1.msra.mxu0 %v416
  %646 = vmatprep.subr.mxu0 %v421
  %647 = vmatpush1.msra.mxu0 %v420
  %648 = vmatprep.subr.mxu0 %v425
  %649 = vmatpush1.msra.mxu0 %v424
  %650 = vmatprep.subr.mxu0 %v429
  %651 = vmatpush1.msra.mxu0 %v428
  %652 = vmatprep.subr.mxu0 %v433
  %653 = vmatpush1.msra.mxu0 %v432
  %654 = vmatprep.subr.mxu0 %v437
  %655 = vmatpush1.msra.mxu0 %v436
  %656 = vmatprep.subr.mxu0 0.0
  %657 = vmatpush1.msra.mxu0 0.0
  %658 = vmatprep.subr.mxu0 0.0
  %659 = vmatpush1.msra.mxu0 0.0
  %660 = vmatprep.subr.mxu0 0.0
  %661 = vmatpush1.msra.mxu0 0.0
  %662 = vmatprep.subr.mxu0 0.0
  %663 = vmatpush1.msra.mxu0 0.0
  %664 = vmatprep.subr.mxu0 0.0
  %665 = vmatpush1.msra.mxu0 0.0
  %666 = vmatprep.subr.mxu0 0.0
  %667 = vmatpush1.msra.mxu0 0.0
  %668 = vmatprep.subr.mxu0 0.0
  %669 = vmatpush1.msra.mxu0 0.0
  %670 = vmatprep.subr.mxu0 0.0
  %671 = vmatpush1.msra.mxu0 0.0
  %672 = vmatprep.subr.mxu0 0.0
  %673 = vmatpush1.msra.mxu0 0.0
  %674 = vmatprep.subr.mxu0 0.0
  %675 = vmatpush1.msra.mxu0 0.0
  %676 = vmatprep.subr.mxu0 0.0
  %677 = vmatpush1.msra.mxu0 0.0
  %678 = vmatprep.subr.mxu0 0.0
  %679 = vmatpush1.msra.mxu0 0.0
  %680 = vmatprep.subr.mxu0 0.0
  %681 = vmatpush1.msra.mxu0 0.0
  %682 = vmatprep.subr.mxu0 0.0
  %683 = vmatpush1.msra.mxu0 0.0
  %684 = vmatprep.subr.mxu0 0.0
  %685 = vmatpush1.msra.mxu0 0.0
  %686 = vmatprep.subr.mxu0 0.0
  %687 = vmatpush1.msra.mxu0 0.0
  %688 = vmatprep.mubr.f32.mxu0 0.0
  %689 = vmatmul.mubr.f32.gmra.mrb[0].mxu0 %v613
  %v690 = vpop.f32.mrb[0].mxu0
  %v691 = vadd.f32 0.0, %v690
  %v692 = vpop.f32.mrb[0].mxu0
  %v693 = vadd.f32 0.0, %v692
  %694 = vdwg.mxu0
  %695 = vmatprep.subr.mxu0 %v379
  %696 = vmatpush1.msra.mxu0 %v378
  %697 = vmatprep.subr.mxu0 %v383
  %698 = vmatpush1.msra.mxu0 %v382
  %699 = vmatprep.subr.mxu0 %v387
  %700 = vmatpush1.msra.mxu0 %v386
  %701 = vmatprep.subr.mxu0 %v391
  %702 = vmatpush1.msra.mxu0 %v390
  %703 = vmatprep.subr.mxu0 %v395
  %704 = vmatpush1.msra.mxu0 %v394
  %705 = vmatprep.subr.mxu0 %v399
  %706 = vmatpush1.msra.mxu0 %v398
  %707 = vmatprep.subr.mxu0 %v403
  %708 = vmatpush1.msra.mxu0 %v402
  %709 = vmatprep.subr.mxu0 %v407
  %710 = vmatpush1.msra.mxu0 %v406
  %711 = vmatprep.subr.mxu0 %v411
  %712 = vmatpush1.msra.mxu0 %v410
  %713 = vmatprep.subr.mxu0 %v415
  %714 = vmatpush1.msra.mxu0 %v414
  %715 = vmatprep.subr.mxu0 %v419
  %716 = vmatpush1.msra.mxu0 %v418
  %717 = vmatprep.subr.mxu0 %v423
  %718 = vmatpush1.msra.mxu0 %v422
  %719 = vmatprep.subr.mxu0 %v427
  %720 = vmatpush1.msra.mxu0 %v426
  %721 = vmatprep.subr.mxu0 %v431
  %722 = vmatpush1.msra.mxu0 %v430
  %723 = vmatprep.subr.mxu0 %v435
  %724 = vmatpush1.msra.mxu0 %v434
  %725 = vmatprep.subr.mxu0 %v439
  %726 = vmatpush1.msra.mxu0 %v438
  %727 = vmatprep.subr.mxu0 0.0
  %728 = vmatpush1.msra.mxu0 0.0
  %729 = vmatprep.subr.mxu0 0.0
  %730 = vmatpush1.msra.mxu0 0.0
  %731 = vmatprep.subr.mxu0 0.0
  %732 = vmatpush1.msra.mxu0 0.0
  %733 = vmatprep.subr.mxu0 0.0
  %734 = vmatpush1.msra.mxu0 0.0
  %735 = vmatprep.subr.mxu0 0.0
  %736 = vmatpush1.msra.mxu0 0.0
  %737 = vmatprep.subr.mxu0 0.0
  %738 = vmatpush1.msra.mxu0 0.0
  %739 = vmatprep.subr.mxu0 0.0
  %740 = vmatpush1.msra.mxu0 0.0
  %741 = vmatprep.subr.mxu0 0.0
  %742 = vmatpush1.msra.mxu0 0.0
  %743 = vmatprep.subr.mxu0 0.0
  %744 = vmatpush1.msra.mxu0 0.0
  %745 = vmatprep.subr.mxu0 0.0
  %746 = vmatpush1.msra.mxu0 0.0
  %747 = vmatprep.subr.mxu0 0.0
  %748 = vmatpush1.msra.mxu0 0.0
  %749 = vmatprep.subr.mxu0 0.0
  %750 = vmatpush1.msra.mxu0 0.0
  %751 = vmatprep.subr.mxu0 0.0
  %752 = vmatpush1.msra.mxu0 0.0
  %753 = vmatprep.subr.mxu0 0.0
  %754 = vmatpush1.msra.mxu0 0.0
  %755 = vmatprep.subr.mxu0 0.0
  %756 = vmatpush1.msra.mxu0 0.0
  %757 = vmatprep.subr.mxu0 0.0
  %758 = vmatpush1.msra.mxu0 0.0
  %759 = vmatprep.mubr.f32.mxu0 0.0
  %760 = vmatmul.mubr.f32.gmra.mrb[0].mxu0 %v613
  %v761 = vpop.f32.mrb[0].mxu0
  %v762 = vadd.f32 0.0, %v761
  %v763 = vpop.f32.mrb[0].mxu0
  %v764 = vadd.f32 0.0, %v763
  %765 = vdwg.mxu0
  %v766 = vadd.f32 %v620, %v691
  %v767 = vadd.f32 %v621, %v693
  %v768 = vadd.f32 %v622, %v762
  %v769 = vadd.f32 %v623, %v764
  %v770 = vxor.u32 %v766, 2147483648
  %v771 = vxor.u32 %v767, 2147483648
  %v772 = vxor.u32 %v768, 2147483648
  %v773 = vmul.f32 %v770, 1.442695
  %v774 = vpow.pop %v773
  %v775 = vmul.f32 %v771, 1.442695
  %v776 = vpow.pop %v775
  %v777 = vmul.f32 %v772, 1.442695
  %v778 = vpow.pop %v777
  %v779 = vadd.f32 %v774, 1.0
  %v780 = vadd.f32 %v776, 1.0
  %v781 = vadd.f32 %v778, 1.0
  %v782 = vrcp.pop %v779
  %v783 = vmul.f32 1.0, %v782
  %v784 = vrcp.pop %v780
  %v785 = vmul.f32 1.0, %v784
  %v786 = vrcp.pop %v781
  %v787 = vmul.f32 1.0, %v786
  %v788 = vtanh.pop %v769
  %v789 = vmul.f32 %v785, %v611
  %v790 = vmul.f32 %v783, %v788
  %v791 = vadd.f32 %v789, %v790
  %v792 = vtanh.pop %v791
  %v793 = vmul.f32 %v787, %v792
  %s794 = scalar_lea.vmem [#allocation3], 8
  %795 = vst.msk [vmem:[%s794] sm:$0xff] %vm614, %v793
  %s796 = scalar_lea.vmem [#allocation3], 48
  %797 = vst.msk [vmem:[%s796] sm:$0xff] %vm617, %v793
  %s798 = scalar_lea.vmem [#allocation2], 64
  %v799 = vld [vmem:[%s798] sm:$0xff]
  %v800 = vld [vmem:[%s798 + $0x8] sm:$0xff]
  %v801 = vld [vmem:[%s798 + $0x10] sm:$0xff]
  %v802 = vld [vmem:[%s798 + $0x18] sm:$0xff]
  %803 = vmatprep.subr.mxu0 %v377
  %804 = vmatpush1.msra.mxu0 %v376
  %805 = vmatprep.subr.mxu0 %v381
  %806 = vmatpush1.msra.mxu0 %v380
  %807 = vmatprep.subr.mxu0 %v385
  %808 = vmatpush1.msra.mxu0 %v384
  %809 = vmatprep.subr.mxu0 %v389
  %810 = vmatpush1.msra.mxu0 %v388
  %811 = vmatprep.subr.mxu0 %v393
  %812 = vmatpush1.msra.mxu0 %v392
  %813 = vmatprep.subr.mxu0 %v397
  %814 = vmatpush1.msra.mxu0 %v396
  %815 = vmatprep.subr.mxu0 %v401
  %816 = vmatpush1.msra.mxu0 %v400
  %817 = vmatprep.subr.mxu0 %v405
  %818 = vmatpush1.msra.mxu0 %v404
  %819 = vmatprep.subr.mxu0 %v409
  %820 = vmatpush1.msra.mxu0 %v408
  %821 = vmatprep.subr.mxu0 %v413
  %822 = vmatpush1.msra.mxu0 %v412
  %823 = vmatprep.subr.mxu0 %v417
  %824 = vmatpush1.msra.mxu0 %v416
  %825 = vmatprep.subr.mxu0 %v421
  %826 = vmatpush1.msra.mxu0 %v420
  %827 = vmatprep.subr.mxu0 %v425
  %828 = vmatpush1.msra.mxu0 %v424
  %829 = vmatprep.subr.mxu0 %v429
  %830 = vmatpush1.msra.mxu0 %v428
  %831 = vmatprep.subr.mxu0 %v433
  %832 = vmatpush1.msra.mxu0 %v432
  %833 = vmatprep.subr.mxu0 %v437
  %834 = vmatpush1.msra.mxu0 %v436
  %835 = vmatprep.subr.mxu0 0.0
  %836 = vmatpush1.msra.mxu0 0.0
  %837 = vmatprep.subr.mxu0 0.0
  %838 = vmatpush1.msra.mxu0 0.0
  %839 = vmatprep.subr.mxu0 0.0
  %840 = vmatpush1.msra.mxu0 0.0
  %841 = vmatprep.subr.mxu0 0.0
  %842 = vmatpush1.msra.mxu0 0.0
  %843 = vmatprep.subr.mxu0 0.0
  %844 = vmatpush1.msra.mxu0 0.0
  %845 = vmatprep.subr.mxu0 0.0
  %846 = vmatpush1.msra.mxu0 0.0
  %847 = vmatprep.subr.mxu0 0.0
  %848 = vmatpush1.msra.mxu0 0.0
  %849 = vmatprep.subr.mxu0 0.0
  %850 = vmatpush1.msra.mxu0 0.0
  %851 = vmatprep.subr.mxu0 0.0
  %852 = vmatpush1.msra.mxu0 0.0
  %853 = vmatprep.subr.mxu0 0.0
  %854 = vmatpush1.msra.mxu0 0.0
  %855 = vmatprep.subr.mxu0 0.0
  %856 = vmatpush1.msra.mxu0 0.0
  %857 = vmatprep.subr.mxu0 0.0
  %858 = vmatpush1.msra.mxu0 0.0
  %859 = vmatprep.subr.mxu0 0.0
  %860 = vmatpush1.msra.mxu0 0.0
  %861 = vmatprep.subr.mxu0 0.0
  %862 = vmatpush1.msra.mxu0 0.0
  %863 = vmatprep.subr.mxu0 0.0
  %864 = vmatpush1.msra.mxu0 0.0
  %865 = vmatprep.subr.mxu0 0.0
  %866 = vmatpush1.msra.mxu0 0.0
  %867 = vmatprep.mubr.f32.mxu0 0.0
  %868 = vmatmul.mubr.f32.gmra.mrb[0].mxu0 %v793
  %v869 = vpop.f32.mrb[0].mxu0
  %v870 = vadd.f32 0.0, %v869
  %v871 = vpop.f32.mrb[0].mxu0
  %v872 = vadd.f32 0.0, %v871
  %873 = vdwg.mxu0
  %874 = vmatprep.subr.mxu0 %v379
  %875 = vmatpush1.msra.mxu0 %v378
  %876 = vmatprep.subr.mxu0 %v383
  %877 = vmatpush1.msra.mxu0 %v382
  %878 = vmatprep.subr.mxu0 %v387
  %879 = vmatpush1.msra.mxu0 %v386
  %880 = vmatprep.subr.mxu0 %v391
  %881 = vmatpush1.msra.mxu0 %v390
  %882 = vmatprep.subr.mxu0 %v395
  %883 = vmatpush1.msra.mxu0 %v394
  %884 = vmatprep.subr.mxu0 %v399
  %885 = vmatpush1.msra.mxu0 %v398
  %886 = vmatprep.subr.mxu0 %v403
  %887 = vmatpush1.msra.mxu0 %v402
  %888 = vmatprep.subr.mxu0 %v407
  %889 = vmatpush1.msra.mxu0 %v406
  %890 = vmatprep.subr.mxu0 %v411
  %891 = vmatpush1.msra.mxu0 %v410
  %892 = vmatprep.subr.mxu0 %v415
  %893 = vmatpush1.msra.mxu0 %v414
  %894 = vmatprep.subr.mxu0 %v419
  %895 = vmatpush1.msra.mxu0 %v418
  %896 = vmatprep.subr.mxu0 %v423
  %897 = vmatpush1.msra.mxu0 %v422
  %898 = vmatprep.subr.mxu0 %v427
  %899 = vmatpush1.msra.mxu0 %v426
  %900 = vmatprep.subr.mxu0 %v431
  %901 = vmatpush1.msra.mxu0 %v430
  %902 = vmatprep.subr.mxu0 %v435
  %903 = vmatpush1.msra.mxu0 %v434
  %904 = vmatprep.subr.mxu0 %v439
  %905 = vmatpush1.msra.mxu0 %v438
  %906 = vmatprep.subr.mxu0 0.0
  %907 = vmatpush1.msra.mxu0 0.0
  %908 = vmatprep.subr.mxu0 0.0
  %909 = vmatpush1.msra.mxu0 0.0
  %910 = vmatprep.subr.mxu0 0.0
  %911 = vmatpush1.msra.mxu0 0.0
  %912 = vmatprep.subr.mxu0 0.0
  %913 = vmatpush1.msra.mxu0 0.0
  %914 = vmatprep.subr.mxu0 0.0
  %915 = vmatpush1.msra.mxu0 0.0
  %916 = vmatprep.subr.mxu0 0.0
  %917 = vmatpush1.msra.mxu0 0.0
  %918 = vmatprep.subr.mxu0 0.0
  %919 = vmatpush1.msra.mxu0 0.0
  %920 = vmatprep.subr.mxu0 0.0
  %921 = vmatpush1.msra.mxu0 0.0
  %922 = vmatprep.subr.mxu0 0.0
  %923 = vmatpush1.msra.mxu0 0.0
  %924 = vmatprep.subr.mxu0 0.0
  %925 = vmatpush1.msra.mxu0 0.0
  %926 = vmatprep.subr.mxu0 0.0
  %927 = vmatpush1.msra.mxu0 0.0
  %928 = vmatprep.subr.mxu0 0.0
  %929 = vmatpush1.msra.mxu0 0.0
  %930 = vmatprep.subr.mxu0 0.0
  %931 = vmatpush1.msra.mxu0 0.0
  %932 = vmatprep.subr.mxu0 0.0
  %933 = vmatpush1.msra.mxu0 0.0
  %934 = vmatprep.subr.mxu0 0.0
  %935 = vmatpush1.msra.mxu0 0.0
  %936 = vmatprep.subr.mxu0 0.0
  %937 = vmatpush1.msra.mxu0 0.0
  %938 = vmatprep.mubr.f32.mxu0 0.0
  %939 = vmatmul.mubr.f32.gmra.mrb[0].mxu0 %v793
  %v940 = vpop.f32.mrb[0].mxu0
  %v941 = vadd.f32 0.0, %v940
  %v942 = vpop.f32.mrb[0].mxu0
  %v943 = vadd.f32 0.0, %v942
  %944 = vdwg.mxu0
  %v945 = vadd.f32 %v799, %v870
  %v946 = vadd.f32 %v800, %v872
  %v947 = vadd.f32 %v801, %v941
  %v948 = vadd.f32 %v802, %v943
  %v949 = vxor.u32 %v945, 2147483648
  %v950 = vxor.u32 %v946, 2147483648
  %v951 = vxor.u32 %v947, 2147483648
  %v952 = vmul.f32 %v949, 1.442695
  %v953 = vpow.pop %v952
  %v954 = vmul.f32 %v950, 1.442695
  %v955 = vpow.pop %v954
  %v956 = vmul.f32 %v951, 1.442695
  %v957 = vpow.pop %v956
  %v958 = vadd.f32 %v953, 1.0
  %v959 = vadd.f32 %v955, 1.0
  %v960 = vadd.f32 %v957, 1.0
  %v961 = vrcp.pop %v958
  %v962 = vmul.f32 1.0, %v961
  %v963 = vrcp.pop %v959
  %v964 = vmul.f32 1.0, %v963
  %v965 = vrcp.pop %v960
  %v966 = vmul.f32 1.0, %v965
  %v967 = vtanh.pop %v948
  %v968 = vmul.f32 %v964, %v791
  %v969 = vmul.f32 %v962, %v967
  %v970 = vadd.f32 %v968, %v969
  %v971 = vtanh.pop %v970
  %v972 = vmul.f32 %v966, %v971
  %s973 = scalar_lea.vmem [#allocation3], 16
  %974 = vst.msk [vmem:[%s973] sm:$0xff] %vm614, %v972
  %s975 = scalar_lea.vmem [#allocation3], 40
  %976 = vst.msk [vmem:[%s975] sm:$0xff] %vm617, %v972
  %s977 = scalar_lea.vmem [#allocation2], 96
  %v978 = vld [vmem:[%s977] sm:$0xff]
  %v979 = vld [vmem:[%s977 + $0x8] sm:$0xff]
  %v980 = vld [vmem:[%s977 + $0x10] sm:$0xff]
  %v981 = vld [vmem:[%s977 + $0x18] sm:$0xff]
  %982 = vmatprep.subr.mxu0 %v377
  %983 = vmatpush1.msra.mxu0 %v376
  %984 = vmatprep.subr.mxu0 %v381
  %985 = vmatpush1.msra.mxu0 %v380
  %986 = vmatprep.subr.mxu0 %v385
  %987 = vmatpush1.msra.mxu0 %v384
  %988 = vmatprep.subr.mxu0 %v389
  %989 = vmatpush1.msra.mxu0 %v388
  %990 = vmatprep.subr.mxu0 %v393
  %991 = vmatpush1.msra.mxu0 %v392
  %992 = vmatprep.subr.mxu0 %v397
  %993 = vmatpush1.msra.mxu0 %v396
  %994 = vmatprep.subr.mxu0 %v401
  %995 = vmatpush1.msra.mxu0 %v400
  %996 = vmatprep.subr.mxu0 %v405
  %997 = vmatpush1.msra.mxu0 %v404
  %998 = vmatprep.subr.mxu0 %v409
  %999 = vmatpush1.msra.mxu0 %v408
  %1000 = vmatprep.subr.mxu0 %v413
  %1001 = vmatpush1.msra.mxu0 %v412
  %1002 = vmatprep.subr.mxu0 %v417
  %1003 = vmatpush1.msra.mxu0 %v416
  %1004 = vmatprep.subr.mxu0 %v421
  %1005 = vmatpush1.msra.mxu0 %v420
  %1006 = vmatprep.subr.mxu0 %v425
  %1007 = vmatpush1.msra.mxu0 %v424
  %1008 = vmatprep.subr.mxu0 %v429
  %1009 = vmatpush1.msra.mxu0 %v428
  %1010 = vmatprep.subr.mxu0 %v433
  %1011 = vmatpush1.msra.mxu0 %v432
  %1012 = vmatprep.subr.mxu0 %v437
  %1013 = vmatpush1.msra.mxu0 %v436
  %1014 = vmatprep.subr.mxu0 0.0
  %1015 = vmatpush1.msra.mxu0 0.0
  %1016 = vmatprep.subr.mxu0 0.0
  %1017 = vmatpush1.msra.mxu0 0.0
  %1018 = vmatprep.subr.mxu0 0.0
  %1019 = vmatpush1.msra.mxu0 0.0
  %1020 = vmatprep.subr.mxu0 0.0
  %1021 = vmatpush1.msra.mxu0 0.0
  %1022 = vmatprep.subr.mxu0 0.0
  %1023 = vmatpush1.msra.mxu0 0.0
  %1024 = vmatprep.subr.mxu0 0.0
  %1025 = vmatpush1.msra.mxu0 0.0
  %1026 = vmatprep.subr.mxu0 0.0
  %1027 = vmatpush1.msra.mxu0 0.0
  %1028 = vmatprep.subr.mxu0 0.0
  %1029 = vmatpush1.msra.mxu0 0.0
  %1030 = vmatprep.subr.mxu0 0.0
  %1031 = vmatpush1.msra.mxu0 0.0
  %1032 = vmatprep.subr.mxu0 0.0
  %1033 = vmatpush1.msra.mxu0 0.0
  %1034 = vmatprep.subr.mxu0 0.0
  %1035 = vmatpush1.msra.mxu0 0.0
  %1036 = vmatprep.subr.mxu0 0.0
  %1037 = vmatpush1.msra.mxu0 0.0
  %1038 = vmatprep.subr.mxu0 0.0
  %1039 = vmatpush1.msra.mxu0 0.0
  %1040 = vmatprep.subr.mxu0 0.0
  %1041 = vmatpush1.msra.mxu0 0.0
  %1042 = vmatprep.subr.mxu0 0.0
  %1043 = vmatpush1.msra.mxu0 0.0
  %1044 = vmatprep.subr.mxu0 0.0
  %1045 = vmatpush1.msra.mxu0 0.0
  %1046 = vmatprep.mubr.f32.mxu0 0.0
  %1047 = vmatmul.mubr.f32.gmra.mrb[0].mxu0 %v972
  %v1048 = vpop.f32.mrb[0].mxu0
  %v1049 = vadd.f32 0.0, %v1048
  %v1050 = vpop.f32.mrb[0].mxu0
  %v1051 = vadd.f32 0.0, %v1050
  %1052 = vdwg.mxu0
  %1053 = vmatprep.subr.mxu0 %v379
  %1054 = vmatpush1.msra.mxu0 %v378
  %1055 = vmatprep.subr.mxu0 %v383
  %1056 = vmatpush1.msra.mxu0 %v382
  %1057 = vmatprep.subr.mxu0 %v387
  %1058 = vmatpush1.msra.mxu0 %v386
  %1059 = vmatprep.subr.mxu0 %v391
  %1060 = vmatpush1.msra.mxu0 %v390
  %1061 = vmatprep.subr.mxu0 %v395
  %1062 = vmatpush1.msra.mxu0 %v394
  %1063 = vmatprep.subr.mxu0 %v399
  %1064 = vmatpush1.msra.mxu0 %v398
  %1065 = vmatprep.subr.mxu0 %v403
  %1066 = vmatpush1.msra.mxu0 %v402
  %1067 = vmatprep.subr.mxu0 %v407
  %1068 = vmatpush1.msra.mxu0 %v406
  %1069 = vmatprep.subr.mxu0 %v411
  %1070 = vmatpush1.msra.mxu0 %v410
  %1071 = vmatprep.subr.mxu0 %v415
  %1072 = vmatpush1.msra.mxu0 %v414
  %1073 = vmatprep.subr.mxu0 %v419
  %1074 = vmatpush1.msra.mxu0 %v418
  %1075 = vmatprep.subr.mxu0 %v423
  %1076 = vmatpush1.msra.mxu0 %v422
  %1077 = vmatprep.subr.mxu0 %v427
  %1078 = vmatpush1.msra.mxu0 %v426
  %1079 = vmatprep.subr.mxu0 %v431
  %1080 = vmatpush1.msra.mxu0 %v430
  %1081 = vmatprep.subr.mxu0 %v435
  %1082 = vmatpush1.msra.mxu0 %v434
  %1083 = vmatprep.subr.mxu0 %v439
  %1084 = vmatpush1.msra.mxu0 %v438
  %1085 = vmatprep.subr.mxu0 0.0
  %1086 = vmatpush1.msra.mxu0 0.0
  %1087 = vmatprep.subr.mxu0 0.0
  %1088 = vmatpush1.msra.mxu0 0.0
  %1089 = vmatprep.subr.mxu0 0.0
  %1090 = vmatpush1.msra.mxu0 0.0
  %1091 = vmatprep.subr.mxu0 0.0
  %1092 = vmatpush1.msra.mxu0 0.0
  %1093 = vmatprep.subr.mxu0 0.0
  %1094 = vmatpush1.msra.mxu0 0.0
  %1095 = vmatprep.subr.mxu0 0.0
  %1096 = vmatpush1.msra.mxu0 0.0
  %1097 = vmatprep.subr.mxu0 0.0
  %1098 = vmatpush1.msra.mxu0 0.0
  %1099 = vmatprep.subr.mxu0 0.0
  %1100 = vmatpush1.msra.mxu0 0.0
  %1101 = vmatprep.subr.mxu0 0.0
  %1102 = vmatpush1.msra.mxu0 0.0
  %1103 = vmatprep.subr.mxu0 0.0
  %1104 = vmatpush1.msra.mxu0 0.0
  %1105 = vmatprep.subr.mxu0 0.0
  %1106 = vmatpush1.msra.mxu0 0.0
  %1107 = vmatprep.subr.mxu0 0.0
  %1108 = vmatpush1.msra.mxu0 0.0
  %1109 = vmatprep.subr.mxu0 0.0
  %1110 = vmatpush1.msra.mxu0 0.0
  %1111 = vmatprep.subr.mxu0 0.0
  %1112 = vmatpush1.msra.mxu0 0.0
  %1113 = vmatprep.subr.mxu0 0.0
  %1114 = vmatpush1.msra.mxu0 0.0
  %1115 = vmatprep.subr.mxu0 0.0
  %1116 = vmatpush1.msra.mxu0 0.0
  %1117 = vmatprep.mubr.f32.mxu0 0.0
  %1118 = vmatmul.mubr.f32.gmra.mrb[0].mxu0 %v972
  %v1119 = vpop.f32.mrb[0].mxu0
  %v1120 = vadd.f32 0.0, %v1119
  %v1121 = vpop.f32.mrb[0].mxu0
  %v1122 = vadd.f32 0.0, %v1121
  %1123 = vdwg.mxu0
  %v1124 = vadd.f32 %v978, %v1049
  %v1125 = vadd.f32 %v979, %v1051
  %v1126 = vadd.f32 %v980, %v1120
  %v1127 = vadd.f32 %v981, %v1122
  %v1128 = vxor.u32 %v1124, 2147483648
  %v1129 = vxor.u32 %v1125, 2147483648
  %v1130 = vxor.u32 %v1126, 2147483648
  %v1131 = vmul.f32 %v1128, 1.442695
  %v1132 = vpow.pop %v1131
  %v1133 = vmul.f32 %v1129, 1.442695
  %v1134 = vpow.pop %v1133
  %v1135 = vmul.f32 %v1130, 1.442695
  %v1136 = vpow.pop %v1135
  %v1137 = vadd.f32 %v1132, 1.0
  %v1138 = vadd.f32 %v1134, 1.0
  %v1139 = vadd.f32 %v1136, 1.0
  %v1140 = vrcp.pop %v1137
  %v1141 = vmul.f32 1.0, %v1140
  %v1142 = vrcp.pop %v1138
  %v1143 = vmul.f32 1.0, %v1142
  %v1144 = vrcp.pop %v1139
  %v1145 = vmul.f32 1.0, %v1144
  %v1146 = vtanh.pop %v1127
  %v1147 = vmul.f32 %v1143, %v970
  %v1148 = vmul.f32 %v1141, %v1146
  %v1149 = vadd.f32 %v1147, %v1148
  %v1150 = vtanh.pop %v1149
  %v1151 = vmul.f32 %v1145, %v1150
  %s1152 = scalar_lea.vmem [#allocation3], 24
  %1153 = vst.msk [vmem:[%s1152] sm:$0xff] %vm614, %v1151
  %s1154 = scalar_lea.vmem [#allocation3], 32
  %1155 = vst.msk [vmem:[%s1154] sm:$0xff] %vm617, %v1151
  %s1156 = scalar_lea.vmem [#allocation2], 128
  %v1157 = vld [vmem:[%s1156] sm:$0xff]
  %v1158 = vld [vmem:[%s1156 + $0x8] sm:$0xff]
  %v1159 = vld [vmem:[%s1156 + $0x10] sm:$0xff]
  %v1160 = vld [vmem:[%s1156 + $0x18] sm:$0xff]
  %1161 = vmatprep.subr.mxu0 %v377
  %1162 = vmatpush1.msra.mxu0 %v376
  %1163 = vmatprep.subr.mxu0 %v381
  %1164 = vmatpush1.msra.mxu0 %v380
  %1165 = vmatprep.subr.mxu0 %v385
  %1166 = vmatpush1.msra.mxu0 %v384
  %1167 = vmatprep.subr.mxu0 %v389
  %1168 = vmatpush1.msra.mxu0 %v388
  %1169 = vmatprep.subr.mxu0 %v393
  %1170 = vmatpush1.msra.mxu0 %v392
  %1171 = vmatprep.subr.mxu0 %v397
  %1172 = vmatpush1.msra.mxu0 %v396
  %1173 = vmatprep.subr.mxu0 %v401
  %1174 = vmatpush1.msra.mxu0 %v400
  %1175 = vmatprep.subr.mxu0 %v405
  %1176 = vmatpush1.msra.mxu0 %v404
  %1177 = vmatprep.subr.mxu0 %v409
  %1178 = vmatpush1.msra.mxu0 %v408
  %1179 = vmatprep.subr.mxu0 %v413
  %1180 = vmatpush1.msra.mxu0 %v412
  %1181 = vmatprep.subr.mxu0 %v417
  %1182 = vmatpush1.msra.mxu0 %v416
  %1183 = vmatprep.subr.mxu0 %v421
  %1184 = vmatpush1.msra.mxu0 %v420
  %1185 = vmatprep.subr.mxu0 %v425
  %1186 = vmatpush1.msra.mxu0 %v424
  %1187 = vmatprep.subr.mxu0 %v429
  %1188 = vmatpush1.msra.mxu0 %v428
  %1189 = vmatprep.subr.mxu0 %v433
  %1190 = vmatpush1.msra.mxu0 %v432
  %1191 = vmatprep.subr.mxu0 %v437
  %1192 = vmatpush1.msra.mxu0 %v436
  %1193 = vmatprep.subr.mxu0 0.0
  %1194 = vmatpush1.msra.mxu0 0.0
  %1195 = vmatprep.subr.mxu0 0.0
  %1196 = vmatpush1.msra.mxu0 0.0
  %1197 = vmatprep.subr.mxu0 0.0
  %1198 = vmatpush1.msra.mxu0 0.0
  %1199 = vmatprep.subr.mxu0 0.0
  %1200 = vmatpush1.msra.mxu0 0.0
  %1201 = vmatprep.subr.mxu0 0.0
  %1202 = vmatpush1.msra.mxu0 0.0
  %1203 = vmatprep.subr.mxu0 0.0
  %1204 = vmatpush1.msra.mxu0 0.0
  %1205 = vmatprep.subr.mxu0 0.0
  %1206 = vmatpush1.msra.mxu0 0.0
  %1207 = vmatprep.subr.mxu0 0.0
  %1208 = vmatpush1.msra.mxu0 0.0
  %1209 = vmatprep.subr.mxu0 0.0
  %1210 = vmatpush1.msra.mxu0 0.0
  %1211 = vmatprep.subr.mxu0 0.0
  %1212 = vmatpush1.msra.mxu0 0.0
  %1213 = vmatprep.subr.mxu0 0.0
  %1214 = vmatpush1.msra.mxu0 0.0
  %1215 = vmatprep.subr.mxu0 0.0
  %1216 = vmatpush1.msra.mxu0 0.0
  %1217 = vmatprep.subr.mxu0 0.0
  %1218 = vmatpush1.msra.mxu0 0.0
  %1219 = vmatprep.subr.mxu0 0.0
  %1220 = vmatpush1.msra.mxu0 0.0
  %1221 = vmatprep.subr.mxu0 0.0
  %1222 = vmatpush1.msra.mxu0 0.0
  %1223 = vmatprep.subr.mxu0 0.0
  %1224 = vmatpush1.msra.mxu0 0.0
  %1225 = vmatprep.mubr.f32.mxu0 0.0
  %1226 = vmatmul.mubr.f32.gmra.mrb[0].mxu0 %v1151
  %v1227 = vpop.f32.mrb[0].mxu0
  %v1228 = vadd.f32 0.0, %v1227
  %v1229 = vpop.f32.mrb[0].mxu0
  %v1230 = vadd.f32 0.0, %v1229
  %1231 = vdwg.mxu0
  %1232 = vmatprep.subr.mxu0 %v379
  %1233 = vmatpush1.msra.mxu0 %v378
  %1234 = vmatprep.subr.mxu0 %v383
  %1235 = vmatpush1.msra.mxu0 %v382
  %1236 = vmatprep.subr.mxu0 %v387
  %1237 = vmatpush1.msra.mxu0 %v386
  %1238 = vmatprep.subr.mxu0 %v391
  %1239 = vmatpush1.msra.mxu0 %v390
  %1240 = vmatprep.subr.mxu0 %v395
  %1241 = vmatpush1.msra.mxu0 %v394
  %1242 = vmatprep.subr.mxu0 %v399
  %1243 = vmatpush1.msra.mxu0 %v398
  %1244 = vmatprep.subr.mxu0 %v403
  %1245 = vmatpush1.msra.mxu0 %v402
  %1246 = vmatprep.subr.mxu0 %v407
  %1247 = vmatpush1.msra.mxu0 %v406
  %1248 = vmatprep.subr.mxu0 %v411
  %1249 = vmatpush1.msra.mxu0 %v410
  %1250 = vmatprep.subr.mxu0 %v415
  %1251 = vmatpush1.msra.mxu0 %v414
  %1252 = vmatprep.subr.mxu0 %v419
  %1253 = vmatpush1.msra.mxu0 %v418
  %1254 = vmatprep.subr.mxu0 %v423
  %1255 = vmatpush1.msra.mxu0 %v422
  %1256 = vmatprep.subr.mxu0 %v427
  %1257 = vmatpush1.msra.mxu0 %v426
  %1258 = vmatprep.subr.mxu0 %v431
  %1259 = vmatpush1.msra.mxu0 %v430
  %1260 = vmatprep.subr.mxu0 %v435
  %1261 = vmatpush1.msra.mxu0 %v434
  %1262 = vmatprep.subr.mxu0 %v439
  %1263 = vmatpush1.msra.mxu0 %v438
  %1264 = vmatprep.subr.mxu0 0.0
  %1265 = vmatpush1.msra.mxu0 0.0
  %1266 = vmatprep.subr.mxu0 0.0
  %1267 = vmatpush1.msra.mxu0 0.0
  %1268 = vmatprep.subr.mxu0 0.0
  %1269 = vmatpush1.msra.mxu0 0.0
  %1270 = vmatprep.subr.mxu0 0.0
  %1271 = vmatpush1.msra.mxu0 0.0
  %1272 = vmatprep.subr.mxu0 0.0
  %1273 = vmatpush1.msra.mxu0 0.0
  %1274 = vmatprep.subr.mxu0 0.0
  %1275 = vmatpush1.msra.mxu0 0.0
  %1276 = vmatprep.subr.mxu0 0.0
  %1277 = vmatpush1.msra.mxu0 0.0
  %1278 = vmatprep.subr.mxu0 0.0
  %1279 = vmatpush1.msra.mxu0 0.0
  %1280 = vmatprep.subr.mxu0 0.0
  %1281 = vmatpush1.msra.mxu0 0.0
  %1282 = vmatprep.subr.mxu0 0.0
  %1283 = vmatpush1.msra.mxu0 0.0
  %1284 = vmatprep.subr.mxu0 0.0
  %1285 = vmatpush1.msra.mxu0 0.0
  %1286 = vmatprep.subr.mxu0 0.0
  %1287 = vmatpush1.msra.mxu0 0.0
  %1288 = vmatprep.subr.mxu0 0.0
  %1289 = vmatpush1.msra.mxu0 0.0
  %1290 = vmatprep.subr.mxu0 0.0
  %1291 = vmatpush1.msra.mxu0 0.0
  %1292 = vmatprep.subr.mxu0 0.0
  %1293 = vmatpush1.msra.mxu0 0.0
  %1294 = vmatprep.subr.mxu0 0.0
  %1295 = vmatpush1.msra.mxu0 0.0
  %1296 = vmatprep.mubr.f32.mxu0 0.0
  %1297 = vmatmul.mubr.f32.gmra.mrb[0].mxu0 %v1151
  %v1298 = vpop.f32.mrb[0].mxu0
  %v1299 = vadd.f32 0.0, %v1298
  %v1300 = vpop.f32.mrb[0].mxu0
  %v1301 = vadd.f32 0.0, %v1300
  %1302 = vdwg.mxu0
  %v1303 = vadd.f32 %v1157, %v1228
  %v1304 = vadd.f32 %v1158, %v1230
  %v1305 = vadd.f32 %v1159, %v1299
  %v1306 = vadd.f32 %v1160, %v1301
  %v1307 = vxor.u32 %v1303, 2147483648
  %v1308 = vxor.u32 %v1304, 2147483648
  %v1309 = vxor.u32 %v1305, 2147483648
  %v1310 = vmul.f32 %v1307, 1.442695
  %v1311 = vpow.pop %v1310
  %v1312 = vmul.f32 %v1308, 1.442695
  %v1313 = vpow.pop %v1312
  %v1314 = vmul.f32 %v1309, 1.442695
  %v1315 = vpow.pop %v1314
  %v1316 = vadd.f32 %v1311, 1.0
  %v1317 = vadd.f32 %v1313, 1.0
  %v1318 = vadd.f32 %v1315, 1.0
  %v1319 = vrcp.pop %v1316
  %v1320 = vmul.f32 1.0, %v1319
  %v1321 = vrcp.pop %v1317
  %v1322 = vmul.f32 1.0, %v1321
  %v1323 = vrcp.pop %v1318
  %v1324 = vmul.f32 1.0, %v1323
  %v1325 = vtanh.pop %v1306
  %v1326 = vmul.f32 %v1322, %v1149
  %v1327 = vmul.f32 %v1320, %v1325
  %v1328 = vadd.f32 %v1326, %v1327
  %v1329 = vtanh.pop %v1328
  %v1330 = vmul.f32 %v1324, %v1329
  %1331 = vst.msk [vmem:[%s1154] sm:$0xff] %vm614, %v1330
  %1332 = vst.msk [vmem:[%s1152] sm:$0xff] %vm617, %v1330
  %s1333 = scalar_lea.vmem [#allocation2], 160
  %v1334 = vld [vmem:[%s1333] sm:$0xff]
  %v1335 = vld [vmem:[%s1333 + $0x8] sm:$0xff]
  %v1336 = vld [vmem:[%s1333 + $0x10] sm:$0xff]
  %v1337 = vld [vmem:[%s1333 + $0x18] sm:$0xff]
  %1338 = vmatprep.subr.mxu0 %v377
  %1339 = vmatpush1.msra.mxu0 %v376
  %1340 = vmatprep.subr.mxu0 %v381
  %1341 = vmatpush1.msra.mxu0 %v380
  %1342 = vmatprep.subr.mxu0 %v385
  %1343 = vmatpush1.msra.mxu0 %v384
  %1344 = vmatprep.subr.mxu0 %v389
  %1345 = vmatpush1.msra.mxu0 %v388
  %1346 = vmatprep.subr.mxu0 %v393
  %1347 = vmatpush1.msra.mxu0 %v392
  %1348 = vmatprep.subr.mxu0 %v397
  %1349 = vmatpush1.msra.mxu0 %v396
  %1350 = vmatprep.subr.mxu0 %v401
  %1351 = vmatpush1.msra.mxu0 %v400
  %1352 = vmatprep.subr.mxu0 %v405
  %1353 = vmatpush1.msra.mxu0 %v404
  %1354 = vmatprep.subr.mxu0 %v409
  %1355 = vmatpush1.msra.mxu0 %v408
  %1356 = vmatprep.subr.mxu0 %v413
  %1357 = vmatpush1.msra.mxu0 %v412
  %1358 = vmatprep.subr.mxu0 %v417
  %1359 = vmatpush1.msra.mxu0 %v416
  %1360 = vmatprep.subr.mxu0 %v421
  %1361 = vmatpush1.msra.mxu0 %v420
  %1362 = vmatprep.subr.mxu0 %v425
  %1363 = vmatpush1.msra.mxu0 %v424
  %1364 = vmatprep.subr.mxu0 %v429
  %1365 = vmatpush1.msra.mxu0 %v428
  %1366 = vmatprep.subr.mxu0 %v433
  %1367 = vmatpush1.msra.mxu0 %v432
  %1368 = vmatprep.subr.mxu0 %v437
  %1369 = vmatpush1.msra.mxu0 %v436
  %1370 = vmatprep.subr.mxu0 0.0
  %1371 = vmatpush1.msra.mxu0 0.0
  %1372 = vmatprep.subr.mxu0 0.0
  %1373 = vmatpush1.msra.mxu0 0.0
  %1374 = vmatprep.subr.mxu0 0.0
  %1375 = vmatpush1.msra.mxu0 0.0
  %1376 = vmatprep.subr.mxu0 0.0
  %1377 = vmatpush1.msra.mxu0 0.0
  %1378 = vmatprep.subr.mxu0 0.0
  %1379 = vmatpush1.msra.mxu0 0.0
  %1380 = vmatprep.subr.mxu0 0.0
  %1381 = vmatpush1.msra.mxu0 0.0
  %1382 = vmatprep.subr.mxu0 0.0
  %1383 = vmatpush1.msra.mxu0 0.0
  %1384 = vmatprep.subr.mxu0 0.0
  %1385 = vmatpush1.msra.mxu0 0.0
  %1386 = vmatprep.subr.mxu0 0.0
  %1387 = vmatpush1.msra.mxu0 0.0
  %1388 = vmatprep.subr.mxu0 0.0
  %1389 = vmatpush1.msra.mxu0 0.0
  %1390 = vmatprep.subr.mxu0 0.0
  %1391 = vmatpush1.msra.mxu0 0.0
  %1392 = vmatprep.subr.mxu0 0.0
  %1393 = vmatpush1.msra.mxu0 0.0
  %1394 = vmatprep.subr.mxu0 0.0
  %1395 = vmatpush1.msra.mxu0 0.0
  %1396 = vmatprep.subr.mxu0 0.0
  %1397 = vmatpush1.msra.mxu0 0.0
  %1398 = vmatprep.subr.mxu0 0.0
  %1399 = vmatpush1.msra.mxu0 0.0
  %1400 = vmatprep.subr.mxu0 0.0
  %1401 = vmatpush1.msra.mxu0 0.0
  %1402 = vmatprep.mubr.f32.mxu0 0.0
  %1403 = vmatmul.mubr.f32.gmra.mrb[0].mxu0 %v1330
  %v1404 = vpop.f32.mrb[0].mxu0
  %v1405 = vadd.f32 0.0, %v1404
  %v1406 = vpop.f32.mrb[0].mxu0
  %v1407 = vadd.f32 0.0, %v1406
  %1408 = vdwg.mxu0
  %1409 = vmatprep.subr.mxu0 %v379
  %1410 = vmatpush1.msra.mxu0 %v378
  %1411 = vmatprep.subr.mxu0 %v383
  %1412 = vmatpush1.msra.mxu0 %v382
  %1413 = vmatprep.subr.mxu0 %v387
  %1414 = vmatpush1.msra.mxu0 %v386
  %1415 = vmatprep.subr.mxu0 %v391
  %1416 = vmatpush1.msra.mxu0 %v390
  %1417 = vmatprep.subr.mxu0 %v395
  %1418 = vmatpush1.msra.mxu0 %v394
  %1419 = vmatprep.subr.mxu0 %v399
  %1420 = vmatpush1.msra.mxu0 %v398
  %1421 = vmatprep.subr.mxu0 %v403
  %1422 = vmatpush1.msra.mxu0 %v402
  %1423 = vmatprep.subr.mxu0 %v407
  %1424 = vmatpush1.msra.mxu0 %v406
  %1425 = vmatprep.subr.mxu0 %v411
  %1426 = vmatpush1.msra.mxu0 %v410
  %1427 = vmatprep.subr.mxu0 %v415
  %1428 = vmatpush1.msra.mxu0 %v414
  %1429 = vmatprep.subr.mxu0 %v419
  %1430 = vmatpush1.msra.mxu0 %v418
  %1431 = vmatprep.subr.mxu0 %v423
  %1432 = vmatpush1.msra.mxu0 %v422
  %1433 = vmatprep.subr.mxu0 %v427
  %1434 = vmatpush1.msra.mxu0 %v426
  %1435 = vmatprep.subr.mxu0 %v431
  %1436 = vmatpush1.msra.mxu0 %v430
  %1437 = vmatprep.subr.mxu0 %v435
  %1438 = vmatpush1.msra.mxu0 %v434
  %1439 = vmatprep.subr.mxu0 %v439
  %1440 = vmatpush1.msra.mxu0 %v438
  %1441 = vmatprep.subr.mxu0 0.0
  %1442 = vmatpush1.msra.mxu0 0.0
  %1443 = vmatprep.subr.mxu0 0.0
  %1444 = vmatpush1.msra.mxu0 0.0
  %1445 = vmatprep.subr.mxu0 0.0
  %1446 = vmatpush1.msra.mxu0 0.0
  %1447 = vmatprep.subr.mxu0 0.0
  %1448 = vmatpush1.msra.mxu0 0.0
  %1449 = vmatprep.subr.mxu0 0.0
  %1450 = vmatpush1.msra.mxu0 0.0
  %1451 = vmatprep.subr.mxu0 0.0
  %1452 = vmatpush1.msra.mxu0 0.0
  %1453 = vmatprep.subr.mxu0 0.0
  %1454 = vmatpush1.msra.mxu0 0.0
  %1455 = vmatprep.subr.mxu0 0.0
  %1456 = vmatpush1.msra.mxu0 0.0
  %1457 = vmatprep.subr.mxu0 0.0
  %1458 = vmatpush1.msra.mxu0 0.0
  %1459 = vmatprep.subr.mxu0 0.0
  %1460 = vmatpush1.msra.mxu0 0.0
  %1461 = vmatprep.subr.mxu0 0.0
  %1462 = vmatpush1.msra.mxu0 0.0
  %1463 = vmatprep.subr.mxu0 0.0
  %1464 = vmatpush1.msra.mxu0 0.0
  %1465 = vmatprep.subr.mxu0 0.0
  %1466 = vmatpush1.msra.mxu0 0.0
  %1467 = vmatprep.subr.mxu0 0.0
  %1468 = vmatpush1.msra.mxu0 0.0
  %1469 = vmatprep.subr.mxu0 0.0
  %1470 = vmatpush1.msra.mxu0 0.0
  %1471 = vmatprep.subr.mxu0 0.0
  %1472 = vmatpush1.msra.mxu0 0.0
  %1473 = vmatprep.mubr.f32.mxu0 0.0
  %1474 = vmatmul.mubr.f32.gmra.mrb[0].mxu0 %v1330
  %v1475 = vpop.f32.mrb[0].mxu0
  %v1476 = vadd.f32 0.0, %v1475
  %v1477 = vpop.f32.mrb[0].mxu0
  %v1478 = vadd.f32 0.0, %v1477
  %1479 = vdwg.mxu0
  %v1480 = vadd.f32 %v1334, %v1405
  %v1481 = vadd.f32 %v1335, %v1407
  %v1482 = vadd.f32 %v1336, %v1476
  %v1483 = vadd.f32 %v1337, %v1478
  %v1484 = vxor.u32 %v1480, 2147483648
  %v1485 = vxor.u32 %v1481, 2147483648
  %v1486 = vxor.u32 %v1482, 2147483648
  %v1487 = vmul.f32 %v1484, 1.442695
  %v1488 = vpow.pop %v1487
  %v1489 = vmul.f32 %v1485, 1.442695
  %v1490 = vpow.pop %v1489
  %v1491 = vmul.f32 %v1486, 1.442695
  %v1492 = vpow.pop %v1491
  %v1493 = vadd.f32 %v1488, 1.0
  %v1494 = vadd.f32 %v1490, 1.0
  %v1495 = vadd.f32 %v1492, 1.0
  %v1496 = vrcp.pop %v1493
  %v1497 = vmul.f32 1.0, %v1496
  %v1498 = vrcp.pop %v1494
  %v1499 = vmul.f32 1.0, %v1498
  %v1500 = vrcp.pop %v1495
  %v1501 = vmul.f32 1.0, %v1500
  %v1502 = vtanh.pop %v1483
  %v1503 = vmul.f32 %v1499, %v1328
  %v1504 = vmul.f32 %v1497, %v1502
  %v1505 = vadd.f32 %v1503, %v1504
  %v1506 = vtanh.pop %v1505
  %v1507 = vmul.f32 %v1501, %v1506
  %1508 = vst.msk [vmem:[%s975] sm:$0xff] %vm614, %v1507
  %1509 = vst.msk [vmem:[%s973] sm:$0xff] %vm617, %v1507
  %s1510 = scalar_lea.vmem [#allocation2], 192
  %v1511 = vld [vmem:[%s1510] sm:$0xff]
  %v1512 = vld [vmem:[%s1510 + $0x8] sm:$0xff]
  %v1513 = vld [vmem:[%s1510 + $0x10] sm:$0xff]
  %v1514 = vld [vmem:[%s1510 + $0x18] sm:$0xff]
  %1515 = vmatprep.subr.mxu0 %v377
  %1516 = vmatpush1.msra.mxu0 %v376
  %1517 = vmatprep.subr.mxu0 %v381
  %1518 = vmatpush1.msra.mxu0 %v380
  %1519 = vmatprep.subr.mxu0 %v385
  %1520 = vmatpush1.msra.mxu0 %v384
  %1521 = vmatprep.subr.mxu0 %v389
  %1522 = vmatpush1.msra.mxu0 %v388
  %1523 = vmatprep.subr.mxu0 %v393
  %1524 = vmatpush1.msra.mxu0 %v392
  %1525 = vmatprep.subr.mxu0 %v397
  %1526 = vmatpush1.msra.mxu0 %v396
  %1527 = vmatprep.subr.mxu0 %v401
  %1528 = vmatpush1.msra.mxu0 %v400
  %1529 = vmatprep.subr.mxu0 %v405
  %1530 = vmatpush1.msra.mxu0 %v404
  %1531 = vmatprep.subr.mxu0 %v409
  %1532 = vmatpush1.msra.mxu0 %v408
  %1533 = vmatprep.subr.mxu0 %v413
  %1534 = vmatpush1.msra.mxu0 %v412
  %1535 = vmatprep.subr.mxu0 %v417
  %1536 = vmatpush1.msra.mxu0 %v416
  %1537 = vmatprep.subr.mxu0 %v421
  %1538 = vmatpush1.msra.mxu0 %v420
  %1539 = vmatprep.subr.mxu0 %v425
  %1540 = vmatpush1.msra.mxu0 %v424
  %1541 = vmatprep.subr.mxu0 %v429
  %1542 = vmatpush1.msra.mxu0 %v428
  %1543 = vmatprep.subr.mxu0 %v433
  %1544 = vmatpush1.msra.mxu0 %v432
  %1545 = vmatprep.subr.mxu0 %v437
  %1546 = vmatpush1.msra.mxu0 %v436
  %1547 = vmatprep.subr.mxu0 0.0
  %1548 = vmatpush1.msra.mxu0 0.0
  %1549 = vmatprep.subr.mxu0 0.0
  %1550 = vmatpush1.msra.mxu0 0.0
  %1551 = vmatprep.subr.mxu0 0.0
  %1552 = vmatpush1.msra.mxu0 0.0
  %1553 = vmatprep.subr.mxu0 0.0
  %1554 = vmatpush1.msra.mxu0 0.0
  %1555 = vmatprep.subr.mxu0 0.0
  %1556 = vmatpush1.msra.mxu0 0.0
  %1557 = vmatprep.subr.mxu0 0.0
  %1558 = vmatpush1.msra.mxu0 0.0
  %1559 = vmatprep.subr.mxu0 0.0
  %1560 = vmatpush1.msra.mxu0 0.0
  %1561 = vmatprep.subr.mxu0 0.0
  %1562 = vmatpush1.msra.mxu0 0.0
  %1563 = vmatprep.subr.mxu0 0.0
  %1564 = vmatpush1.msra.mxu0 0.0
  %1565 = vmatprep.subr.mxu0 0.0
  %1566 = vmatpush1.msra.mxu0 0.0
  %1567 = vmatprep.subr.mxu0 0.0
  %1568 = vmatpush1.msra.mxu0 0.0
  %1569 = vmatprep.subr.mxu0 0.0
  %1570 = vmatpush1.msra.mxu0 0.0
  %1571 = vmatprep.subr.mxu0 0.0
  %1572 = vmatpush1.msra.mxu0 0.0
  %1573 = vmatprep.subr.mxu0 0.0
  %1574 = vmatpush1.msra.mxu0 0.0
  %1575 = vmatprep.subr.mxu0 0.0
  %1576 = vmatpush1.msra.mxu0 0.0
  %1577 = vmatprep.subr.mxu0 0.0
  %1578 = vmatpush1.msra.mxu0 0.0
  %1579 = vmatprep.mubr.f32.mxu0 0.0
  %1580 = vmatmul.mubr.f32.gmra.mrb[0].mxu0 %v1507
  %v1581 = vpop.f32.mrb[0].mxu0
  %v1582 = vadd.f32 0.0, %v1581
  %v1583 = vpop.f32.mrb[0].mxu0
  %v1584 = vadd.f32 0.0, %v1583
  %1585 = vdwg.mxu0
  %1586 = vmatprep.subr.mxu0 %v379
  %1587 = vmatpush1.msra.mxu0 %v378
  %1588 = vmatprep.subr.mxu0 %v383
  %1589 = vmatpush1.msra.mxu0 %v382
  %1590 = vmatprep.subr.mxu0 %v387
  %1591 = vmatpush1.msra.mxu0 %v386
  %1592 = vmatprep.subr.mxu0 %v391
  %1593 = vmatpush1.msra.mxu0 %v390
  %1594 = vmatprep.subr.mxu0 %v395
  %1595 = vmatpush1.msra.mxu0 %v394
  %1596 = vmatprep.subr.mxu0 %v399
  %1597 = vmatpush1.msra.mxu0 %v398
  %1598 = vmatprep.subr.mxu0 %v403
  %1599 = vmatpush1.msra.mxu0 %v402
  %1600 = vmatprep.subr.mxu0 %v407
  %1601 = vmatpush1.msra.mxu0 %v406
  %1602 = vmatprep.subr.mxu0 %v411
  %1603 = vmatpush1.msra.mxu0 %v410
  %1604 = vmatprep.subr.mxu0 %v415
  %1605 = vmatpush1.msra.mxu0 %v414
  %1606 = vmatprep.subr.mxu0 %v419
  %1607 = vmatpush1.msra.mxu0 %v418
  %1608 = vmatprep.subr.mxu0 %v423
  %1609 = vmatpush1.msra.mxu0 %v422
  %1610 = vmatprep.subr.mxu0 %v427
  %1611 = vmatpush1.msra.mxu0 %v426
  %1612 = vmatprep.subr.mxu0 %v431
  %1613 = vmatpush1.msra.mxu0 %v430
  %1614 = vmatprep.subr.mxu0 %v435
  %1615 = vmatpush1.msra.mxu0 %v434
  %1616 = vmatprep.subr.mxu0 %v439
  %1617 = vmatpush1.msra.mxu0 %v438
  %1618 = vmatprep.subr.mxu0 0.0
  %1619 = vmatpush1.msra.mxu0 0.0
  %1620 = vmatprep.subr.mxu0 0.0
  %1621 = vmatpush1.msra.mxu0 0.0
  %1622 = vmatprep.subr.mxu0 0.0
  %1623 = vmatpush1.msra.mxu0 0.0
  %1624 = vmatprep.subr.mxu0 0.0
  %1625 = vmatpush1.msra.mxu0 0.0
  %1626 = vmatprep.subr.mxu0 0.0
  %1627 = vmatpush1.msra.mxu0 0.0
  %1628 = vmatprep.subr.mxu0 0.0
  %1629 = vmatpush1.msra.mxu0 0.0
  %1630 = vmatprep.subr.mxu0 0.0
  %1631 = vmatpush1.msra.mxu0 0.0
  %1632 = vmatprep.subr.mxu0 0.0
  %1633 = vmatpush1.msra.mxu0 0.0
  %1634 = vmatprep.subr.mxu0 0.0
  %1635 = vmatpush1.msra.mxu0 0.0
  %1636 = vmatprep.subr.mxu0 0.0
  %1637 = vmatpush1.msra.mxu0 0.0
  %1638 = vmatprep.subr.mxu0 0.0
  %1639 = vmatpush1.msra.mxu0 0.0
  %1640 = vmatprep.subr.mxu0 0.0
  %1641 = vmatpush1.msra.mxu0 0.0
  %1642 = vmatprep.subr.mxu0 0.0
  %1643 = vmatpush1.msra.mxu0 0.0
  %1644 = vmatprep.subr.mxu0 0.0
  %1645 = vmatpush1.msra.mxu0 0.0
  %1646 = vmatprep.subr.mxu0 0.0
  %1647 = vmatpush1.msra.mxu0 0.0
  %1648 = vmatprep.subr.mxu0 0.0
  %1649 = vmatpush1.msra.mxu0 0.0
  %1650 = vmatprep.mubr.f32.mxu0 0.0
  %1651 = vmatmul.mubr.f32.gmra.mrb[0].mxu0 %v1507
  %v1652 = vpop.f32.mrb[0].mxu0
  %v1653 = vadd.f32 0.0, %v1652
  %v1654 = vpop.f32.mrb[0].mxu0
  %v1655 = vadd.f32 0.0, %v1654
  %1656 = vdwg.mxu0
  %v1657 = vadd.f32 %v1511, %v1582
  %v1658 = vadd.f32 %v1512, %v1584
  %v1659 = vadd.f32 %v1513, %v1653
  %v1660 = vadd.f32 %v1514, %v1655
  %v1661 = vxor.u32 %v1657, 2147483648
  %v1662 = vxor.u32 %v1658, 2147483648
  %v1663 = vxor.u32 %v1659, 2147483648
  %v1664 = vmul.f32 %v1661, 1.442695
  %v1665 = vpow.pop %v1664
  %v1666 = vmul.f32 %v1662, 1.442695
  %v1667 = vpow.pop %v1666
  %v1668 = vmul.f32 %v1663, 1.442695
  %v1669 = vpow.pop %v1668
  %v1670 = vadd.f32 %v1665, 1.0
  %v1671 = vadd.f32 %v1667, 1.0
  %v1672 = vadd.f32 %v1669, 1.0
  %v1673 = vrcp.pop %v1670
  %v1674 = vmul.f32 1.0, %v1673
  %v1675 = vrcp.pop %v1671
  %v1676 = vmul.f32 1.0, %v1675
  %v1677 = vrcp.pop %v1672
  %v1678 = vmul.f32 1.0, %v1677
  %v1679 = vtanh.pop %v1660
  %v1680 = vmul.f32 %v1676, %v1505
  %v1681 = vmul.f32 %v1674, %v1679
  %v1682 = vadd.f32 %v1680, %v1681
  %v1683 = vtanh.pop %v1682
  %v1684 = vmul.f32 %v1678, %v1683
  %1685 = vst.msk [vmem:[%s796] sm:$0xff] %vm614, %v1684
  %1686 = vst.msk [vmem:[%s794] sm:$0xff] %vm617, %v1684
  %s1687 = scalar_lea.vmem [#allocation2], 224
  %v1688 = vld [vmem:[%s1687] sm:$0xff]
  %v1689 = vld [vmem:[%s1687 + $0x8] sm:$0xff]
  %v1690 = vld [vmem:[%s1687 + $0x10] sm:$0xff]
  %v1691 = vld [vmem:[%s1687 + $0x18] sm:$0xff]
  %1692 = vmatprep.subr.mxu0 %v377
  %1693 = vmatpush1.msra.mxu0 %v376
  %1694 = vmatprep.subr.mxu0 %v381
  %1695 = vmatpush1.msra.mxu0 %v380
  %1696 = vmatprep.subr.mxu0 %v385
  %1697 = vmatpush1.msra.mxu0 %v384
  %1698 = vmatprep.subr.mxu0 %v389
  %1699 = vmatpush1.msra.mxu0 %v388
  %1700 = vmatprep.subr.mxu0 %v393
  %1701 = vmatpush1.msra.mxu0 %v392
  %1702 = vmatprep.subr.mxu0 %v397
  %1703 = vmatpush1.msra.mxu0 %v396
  %1704 = vmatprep.subr.mxu0 %v401
  %1705 = vmatpush1.msra.mxu0 %v400
  %1706 = vmatprep.subr.mxu0 %v405
  %1707 = vmatpush1.msra.mxu0 %v404
  %1708 = vmatprep.subr.mxu0 %v409
  %1709 = vmatpush1.msra.mxu0 %v408
  %1710 = vmatprep.subr.mxu0 %v413
  %1711 = vmatpush1.msra.mxu0 %v412
  %1712 = vmatprep.subr.mxu0 %v417
  %1713 = vmatpush1.msra.mxu0 %v416
  %1714 = vmatprep.subr.mxu0 %v421
  %1715 = vmatpush1.msra.mxu0 %v420
  %1716 = vmatprep.subr.mxu0 %v425
  %1717 = vmatpush1.msra.mxu0 %v424
  %1718 = vmatprep.subr.mxu0 %v429
  %1719 = vmatpush1.msra.mxu0 %v428
  %1720 = vmatprep.subr.mxu0 %v433
  %1721 = vmatpush1.msra.mxu0 %v432
  %1722 = vmatprep.subr.mxu0 %v437
  %1723 = vmatpush1.msra.mxu0 %v436
  %1724 = vmatprep.subr.mxu0 0.0
  %1725 = vmatpush1.msra.mxu0 0.0
  %1726 = vmatprep.subr.mxu0 0.0
  %1727 = vmatpush1.msra.mxu0 0.0
  %1728 = vmatprep.subr.mxu0 0.0
  %1729 = vmatpush1.msra.mxu0 0.0
  %1730 = vmatprep.subr.mxu0 0.0
  %1731 = vmatpush1.msra.mxu0 0.0
  %1732 = vmatprep.subr.mxu0 0.0
  %1733 = vmatpush1.msra.mxu0 0.0
  %1734 = vmatprep.subr.mxu0 0.0
  %1735 = vmatpush1.msra.mxu0 0.0
  %1736 = vmatprep.subr.mxu0 0.0
  %1737 = vmatpush1.msra.mxu0 0.0
  %1738 = vmatprep.subr.mxu0 0.0
  %1739 = vmatpush1.msra.mxu0 0.0
  %1740 = vmatprep.subr.mxu0 0.0
  %1741 = vmatpush1.msra.mxu0 0.0
  %1742 = vmatprep.subr.mxu0 0.0
  %1743 = vmatpush1.msra.mxu0 0.0
  %1744 = vmatprep.subr.mxu0 0.0
  %1745 = vmatpush1.msra.mxu0 0.0
  %1746 = vmatprep.subr.mxu0 0.0
  %1747 = vmatpush1.msra.mxu0 0.0
  %1748 = vmatprep.subr.mxu0 0.0
  %1749 = vmatpush1.msra.mxu0 0.0
  %1750 = vmatprep.subr.mxu0 0.0
  %1751 = vmatpush1.msra.mxu0 0.0
  %1752 = vmatprep.subr.mxu0 0.0
  %1753 = vmatpush1.msra.mxu0 0.0
  %1754 = vmatprep.subr.mxu0 0.0
  %1755 = vmatpush1.msra.mxu0 0.0
  %1756 = vmatprep.mubr.f32.mxu0 0.0
  %1757 = vmatmul.mubr.f32.gmra.mrb[0].mxu0 %v1684
  %v1758 = vpop.f32.mrb[0].mxu0
  %v1759 = vadd.f32 0.0, %v1758
  %v1760 = vpop.f32.mrb[0].mxu0
  %v1761 = vadd.f32 0.0, %v1760
  %1762 = vdwg.mxu0
  %1763 = vmatprep.subr.mxu0 %v379
  %1764 = vmatpush1.msra.mxu0 %v378
  %1765 = vmatprep.subr.mxu0 %v383
  %1766 = vmatpush1.msra.mxu0 %v382
  %1767 = vmatprep.subr.mxu0 %v387
  %1768 = vmatpush1.msra.mxu0 %v386
  %1769 = vmatprep.subr.mxu0 %v391
  %1770 = vmatpush1.msra.mxu0 %v390
  %1771 = vmatprep.subr.mxu0 %v395
  %1772 = vmatpush1.msra.mxu0 %v394
  %1773 = vmatprep.subr.mxu0 %v399
  %1774 = vmatpush1.msra.mxu0 %v398
  %1775 = vmatprep.subr.mxu0 %v403
  %1776 = vmatpush1.msra.mxu0 %v402
  %1777 = vmatprep.subr.mxu0 %v407
  %1778 = vmatpush1.msra.mxu0 %v406
  %1779 = vmatprep.subr.mxu0 %v411
  %1780 = vmatpush1.msra.mxu0 %v410
  %1781 = vmatprep.subr.mxu0 %v415
  %1782 = vmatpush1.msra.mxu0 %v414
  %1783 = vmatprep.subr.mxu0 %v419
  %1784 = vmatpush1.msra.mxu0 %v418
  %1785 = vmatprep.subr.mxu0 %v423
  %1786 = vmatpush1.msra.mxu0 %v422
  %1787 = vmatprep.subr.mxu0 %v427
  %1788 = vmatpush1.msra.mxu0 %v426
  %1789 = vmatprep.subr.mxu0 %v431
  %1790 = vmatpush1.msra.mxu0 %v430
  %1791 = vmatprep.subr.mxu0 %v435
  %1792 = vmatpush1.msra.mxu0 %v434
  %1793 = vmatprep.subr.mxu0 %v439
  %1794 = vmatpush1.msra.mxu0 %v438
  %1795 = vmatprep.subr.mxu0 0.0
  %1796 = vmatpush1.msra.mxu0 0.0
  %1797 = vmatprep.subr.mxu0 0.0
  %1798 = vmatpush1.msra.mxu0 0.0
  %1799 = vmatprep.subr.mxu0 0.0
  %1800 = vmatpush1.msra.mxu0 0.0
  %1801 = vmatprep.subr.mxu0 0.0
  %1802 = vmatpush1.msra.mxu0 0.0
  %1803 = vmatprep.subr.mxu0 0.0
  %1804 = vmatpush1.msra.mxu0 0.0
  %1805 = vmatprep.subr.mxu0 0.0
  %1806 = vmatpush1.msra.mxu0 0.0
  %1807 = vmatprep.subr.mxu0 0.0
  %1808 = vmatpush1.msra.mxu0 0.0
  %1809 = vmatprep.subr.mxu0 0.0
  %1810 = vmatpush1.msra.mxu0 0.0
  %1811 = vmatprep.subr.mxu0 0.0
  %1812 = vmatpush1.msra.mxu0 0.0
  %1813 = vmatprep.subr.mxu0 0.0
  %1814 = vmatpush1.msra.mxu0 0.0
  %1815 = vmatprep.subr.mxu0 0.0
  %1816 = vmatpush1.msra.mxu0 0.0
  %1817 = vmatprep.subr.mxu0 0.0
  %1818 = vmatpush1.msra.mxu0 0.0
  %1819 = vmatprep.subr.mxu0 0.0
  %1820 = vmatpush1.msra.mxu0 0.0
  %1821 = vmatprep.subr.mxu0 0.0
  %1822 = vmatpush1.msra.mxu0 0.0
  %1823 = vmatprep.subr.mxu0 0.0
  %1824 = vmatpush1.msra.mxu0 0.0
  %1825 = vmatprep.subr.mxu0 0.0
  %1826 = vmatpush1.msra.mxu0 0.0
  %1827 = vmatprep.mubr.f32.mxu0 0.0
  %1828 = vmatmul.mubr.f32.gmra.mrb[0].mxu0 %v1684
  %v1829 = vpop.f32.mrb[0].mxu0
  %v1830 = vadd.f32 0.0, %v1829
  %v1831 = vpop.f32.mrb[0].mxu0
  %v1832 = vadd.f32 0.0, %v1831
  %1833 = vdwg.mxu0
  %v1834 = vadd.f32 %v1688, %v1759
  %v1835 = vadd.f32 %v1689, %v1761
  %v1836 = vadd.f32 %v1690, %v1830
  %v1837 = vadd.f32 %v1691, %v1832
  %v1838 = vxor.u32 %v1834, 2147483648
  %v1839 = vxor.u32 %v1835, 2147483648
  %v1840 = vxor.u32 %v1836, 2147483648
  %v1841 = vmul.f32 %v1838, 1.442695
  %v1842 = vpow.pop %v1841
  %v1843 = vmul.f32 %v1839, 1.442695
  %v1844 = vpow.pop %v1843
  %v1845 = vmul.f32 %v1840, 1.442695
  %v1846 = vpow.pop %v1845
  %v1847 = vadd.f32 %v1842, 1.0
  %v1848 = vadd.f32 %v1844, 1.0
  %v1849 = vadd.f32 %v1846, 1.0
  %v1850 = vrcp.pop %v1847
  %v1851 = vmul.f32 1.0, %v1850
  %v1852 = vrcp.pop %v1848
  %v1853 = vmul.f32 1.0, %v1852
  %v1854 = vrcp.pop %v1849
  %v1855 = vmul.f32 1.0, %v1854
  %v1856 = vtanh.pop %v1837
  %v1857 = vmul.f32 %v1853, %v1682
  %v1858 = vmul.f32 %v1851, %v1856
  %v1859 = vadd.f32 %v1857, %v1858
  %v1860 = vtanh.pop %v1859
  %v1861 = vmul.f32 %v1855, %v1860
  %1862 = vst.msk [vmem:[%s616] sm:$0xff] %vm614, %v1861
  %1863 = vst.msk [vmem:[#allocation3] sm:$0xff] %vm617, %v1861
  %v1864 = vld [vmem:[#allocation3] sm:$0xff]
  %v1865 = vld [vmem:[#allocation3 + $0x8] sm:$0xff]
  %v1866 = vld [vmem:[#allocation3 + $0x10] sm:$0xff]
  %v1867 = vld [vmem:[#allocation3 + $0x18] sm:$0xff]
  %v1868 = vld [vmem:[#allocation3 + $0x20] sm:$0xff]
  %v1869 = vld [vmem:[#allocation3 + $0x28] sm:$0xff]
  %v1870 = vld [vmem:[#allocation3 + $0x30] sm:$0xff]
  %v1871 = vld [vmem:[#allocation3 + $0x38] sm:$0xff]
  %v1872 = vld [vmem:[%s4] sm:$0xff]
  %v1873 = vld [vmem:[%s4 + $0x8] sm:$0xff]
  %v1874 = vld [vmem:[%s4 + $0x10] sm:$0xff]
  %v1875 = vld [vmem:[%s4 + $0x18] sm:$0xff]
  %v1876 = vld [vmem:[%s4 + $0x20] sm:$0xff]
  %v1877 = vld [vmem:[%s4 + $0x28] sm:$0xff]
  %v1878 = vld [vmem:[%s4 + $0x30] sm:$0xff]
  %v1879 = vld [vmem:[%s4 + $0x38] sm:$0xff]
  %v1880 = vld [vmem:[%s4 + $0x40] sm:$0xff]
  %v1881 = vld [vmem:[%s4 + $0x48] sm:$0xff]
  %v1882 = vld [vmem:[%s4 + $0x50] sm:$0xff]
  %v1883 = vld [vmem:[%s4 + $0x58] sm:$0xff]
  %v1884 = vld [vmem:[%s4 + $0x60] sm:$0xff]
  %v1885 = vld [vmem:[%s4 + $0x68] sm:$0xff]
  %v1886 = vld [vmem:[%s4 + $0x70] sm:$0xff]
  %v1887 = vld [vmem:[%s4 + $0x78] sm:$0xff]
  %v1888 = vld [vmem:[%s5] sm:$0x1]
  %v1890 = vlaneseq
  %v1891 = vshrl.u32 %v1890, 7
  %v1892 = vsub.s32 0, %v1891
  %v1893 = vrot.slane %v1888, %v1892
  %1895 = vmatprep.subr.mxu0 0.0
  %1896 = vmatpush1.msra.mxu0 %v1872
  %1897 = vmatprep.subr.mxu0 0.0
  %1898 = vmatpush1.msra.mxu0 %v1873
  %1899 = vmatprep.subr.mxu0 0.0
  %1900 = vmatpush1.msra.mxu0 %v1874
  %1901 = vmatprep.subr.mxu0 0.0
  %1902 = vmatpush1.msra.mxu0 %v1875
  %1903 = vmatprep.subr.mxu0 0.0
  %1904 = vmatpush1.msra.mxu0 %v1876
  %1905 = vmatprep.subr.mxu0 0.0
  %1906 = vmatpush1.msra.mxu0 %v1877
  %1907 = vmatprep.subr.mxu0 0.0
  %1908 = vmatpush1.msra.mxu0 %v1878
  %1909 = vmatprep.subr.mxu0 0.0
  %1910 = vmatpush1.msra.mxu0 %v1879
  %1911 = vmatprep.subr.mxu0 0.0
  %1912 = vmatpush1.msra.mxu0 %v1880
  %1913 = vmatprep.subr.mxu0 0.0
  %1914 = vmatpush1.msra.mxu0 %v1881
  %1915 = vmatprep.subr.mxu0 0.0
  %1916 = vmatpush1.msra.mxu0 %v1882
  %1917 = vmatprep.subr.mxu0 0.0
  %1918 = vmatpush1.msra.mxu0 %v1883
  %1919 = vmatprep.subr.mxu0 0.0
  %1920 = vmatpush1.msra.mxu0 %v1884
  %1921 = vmatprep.subr.mxu0 0.0
  %1922 = vmatpush1.msra.mxu0 %v1885
  %1923 = vmatprep.subr.mxu0 0.0
  %1924 = vmatpush1.msra.mxu0 %v1886
  %1925 = vmatprep.subr.mxu0 0.0
  %1926 = vmatpush1.msra.mxu0 %v1887
  %1927 = vmatprep.subr.mxu0 0.0
  %1928 = vmatpush1.msra.mxu0 0.0
  %1929 = vmatprep.subr.mxu0 0.0
  %1930 = vmatpush1.msra.mxu0 0.0
  %1931 = vmatprep.subr.mxu0 0.0
  %1932 = vmatpush1.msra.mxu0 0.0
  %1933 = vmatprep.subr.mxu0 0.0
  %1934 = vmatpush1.msra.mxu0 0.0
  %1935 = vmatprep.subr.mxu0 0.0
  %1936 = vmatpush1.msra.mxu0 0.0
  %1937 = vmatprep.subr.mxu0 0.0
  %1938 = vmatpush1.msra.mxu0 0.0
  %1939 = vmatprep.subr.mxu0 0.0
  %1940 = vmatpush1.msra.mxu0 0.0
  %1941 = vmatprep.subr.mxu0 0.0
  %1942 = vmatpush1.msra.mxu0 0.0
  %1943 = vmatprep.subr.mxu0 0.0
  %1944 = vmatpush1.msra.mxu0 0.0
  %1945 = vmatprep.subr.mxu0 0.0
  %1946 = vmatpush1.msra.mxu0 0.0
  %1947 = vmatprep.subr.mxu0 0.0
  %1948 = vmatpush1.msra.mxu0 0.0
  %1949 = vmatprep.subr.mxu0 0.0
  %1950 = vmatpush1.msra.mxu0 0.0
  %1951 = vmatprep.subr.mxu0 0.0
  %1952 = vmatpush1.msra.mxu0 0.0
  %1953 = vmatprep.subr.mxu0 0.0
  %1954 = vmatpush1.msra.mxu0 0.0
  %1955 = vmatprep.subr.mxu0 0.0
  %1956 = vmatpush1.msra.mxu0 0.0
  %1957 = vmatprep.subr.mxu0 0.0
  %1958 = vmatpush1.msra.mxu0 0.0
  %1959 = vmatprep.mubr.f32.mxu0 0.0
  %1960 = vmatmul.mubr.f32.gmra.mrb[0].mxu0 %v1864
  %v1961 = vpop.f32.mrb[0].mxu0
  %v1962 = vadd.f32 %v1893, %v1961
  %v1963 = vpop.f32.mrb[0].mxu0
  %1964 = vmatprep.mubr.f32.mxu0 0.0
  %1965 = vmatmul.mubr.f32.gmra.mrb[0].mxu0 %v1865
  %v1966 = vpop.f32.mrb[0].mxu0
  %v1967 = vadd.f32 %v1893, %v1966
  %v1968 = vpop.f32.mrb[0].mxu0
  %1969 = vmatprep.mubr.f32.mxu0 0.0
  %1970 = vmatmul.mubr.f32.gmra.mrb[0].mxu0 %v1866
  %v1971 = vpop.f32.mrb[0].mxu0
  %v1972 = vadd.f32 %v1893, %v1971
  %v1973 = vpop.f32.mrb[0].mxu0
  %1974 = vmatprep.mubr.f32.mxu0 0.0
  %1975 = vmatmul.mubr.f32.gmra.mrb[0].mxu0 %v1867
  %v1976 = vpop.f32.mrb[0].mxu0
  %v1977 = vadd.f32 %v1893, %v1976
  %v1978 = vpop.f32.mrb[0].mxu0
  %1979 = vmatprep.mubr.f32.mxu0 0.0
  %1980 = vmatmul.mubr.f32.gmra.mrb[0].mxu0 %v1868
  %v1981 = vpop.f32.mrb[0].mxu0
  %v1982 = vadd.f32 %v1893, %v1981
  %v1983 = vpop.f32.mrb[0].mxu0
  %1984 = vmatprep.mubr.f32.mxu0 0.0
  %1985 = vmatmul.mubr.f32.gmra.mrb[0].mxu0 %v1869
  %v1986 = vpop.f32.mrb[0].mxu0
  %v1987 = vadd.f32 %v1893, %v1986
  %v1988 = vpop.f32.mrb[0].mxu0
  %1989 = vmatprep.mubr.f32.mxu0 0.0
  %1990 = vmatmul.mubr.f32.gmra.mrb[0].mxu0 %v1870
  %v1991 = vpop.f32.mrb[0].mxu0
  %v1992 = vadd.f32 %v1893, %v1991
  %v1993 = vpop.f32.mrb[0].mxu0
  %1994 = vmatprep.mubr.f32.mxu0 0.0
  %1995 = vmatmul.mubr.f32.gmra.mrb[0].mxu0 %v1871
  %v1996 = vpop.f32.mrb[0].mxu0
  %v1997 = vadd.f32 %v1893, %v1996
  %v1998 = vpop.f32.mrb[0].mxu0
  %1999 = vdwg.mxu0
  %2000 = vst [vmem:[%s6] sm:$0xff] %v1962
  %2001 = vst [vmem:[%s6 + $0x8] sm:$0xff] %v1967
  %2002 = vst [vmem:[%s6 + $0x10] sm:$0xff] %v1972
  %2003 = vst [vmem:[%s6 + $0x18] sm:$0xff] %v1977
  %2004 = vst [vmem:[%s6 + $0x20] sm:$0xff] %v1982
  %2005 = vst [vmem:[%s6 + $0x28] sm:$0xff] %v1987
  %2006 = vst [vmem:[%s6 + $0x30] sm:$0xff] %v1992
  %2007 = vst [vmem:[%s6 + $0x38] sm:$0xff] %v1997
  // Predicated region
  $region26: #{rnn_tagger_forward.1} parent=0 // pred_check
    _
  $region27: #{rnn_tagger_forward.1} parent=0 // pred_check_branch
    %2009 = sbr.rel (0) target = $region29
  $region28: #{rnn_tagger_forward.1} parent=0 // pred_region
    _
  $region29: #{rnn_tagger_forward.1} parent=0 // pred_fallthru
    _
  // Predicated region
  $region30: #{rnn_tagger_forward.1} parent=0 // pred_check
    _
  $region31: #{rnn_tagger_forward.1} parent=0 // pred_check_branch
    %2011 = sbr.rel (0) target = $region33
  $region32: #{rnn_tagger_forward.1} parent=0 // pred_region
    _
  $region33: #{rnn_tagger_forward.1} parent=0 // pred_fallthru
    _

</llo_original>
